<compile_context>
chip_gen: v7x
topology: tpu7x:2x2x1
jax: 0.10.0
libtpu: 0.0.40
codegen_flags: <defaults>
</compile_context>

<pallas_src>
import functools

import jax
import jax.numpy as jnp
import numpy as np
from jax.experimental import pallas as pl
from jax.experimental.pallas import tpu as pltpu


def _round_up(x, m):
    return (x + m - 1) // m * m


def _pick_tile(total, candidates):
    for c in candidates:
        if total % c == 0:
            return c
    return total


# ------------------------------------------------------------------ Pallas ---
def _mm_bias_act_kernel(w_ref, a_ref, b_ref, o_ref, acc_ref, *, activation):
    k = pl.program_id(3)

    @pl.when(k == 0)
    def _():
        acc_ref[...] = jnp.zeros_like(acc_ref)

    acc_ref[...] += jnp.dot(w_ref[...], a_ref[...],
                            preferred_element_type=jnp.float32)

    @pl.when(k == pl.num_programs(3) - 1)
    def _():
        acc = acc_ref[...] + b_ref[...]          # f32 bias add in the epilogue
        if activation == "relu":
            acc = jnp.maximum(acc, 0.0)
        elif activation == "sigmoid":
            acc = jax.nn.sigmoid(acc)
        o_ref[...] = acc.astype(o_ref.dtype)


def matmul_bias_act(w_stack, a_stack, bias_col, activation):
    """act(W[p] @ A[p] + b) for every parity slice p.

    w_stack:  (P, co_pad, kc_pad) bf16
    a_stack:  (P, kc_pad, m_pad)  bf16
    bias_col: (co_pad, 1)         f32
    returns   (P, co_pad, m_pad)  bf16
    """
    P, co_pad, kc_pad = w_stack.shape
    Pa, kc2, m_pad = a_stack.shape
    assert P == Pa and kc2 == kc_pad and bias_col.shape == (co_pad, 1)

    tk = _pick_tile(kc_pad, (512, 256, 128))
    # Keep Cout in a single tile whenever possible so the (dominant) A^T
    # stream is only read once per layer.
    tco = co_pad if co_pad <= 512 else _pick_tile(co_pad, (512, 256, 128, 64, 32, 16))

    # Grow the lane (M) tile as far as a ~12 MiB working-set budget allows.
    def _vmem_est(tn):
        return (2 * (tco * tk + tk * tn + tco * tn) * 2   # dbl-buffered bf16 W/A/out
                + 2 * tco * 4                             # bias
                + tco * tn * 4)                           # f32 accumulator

    tn = 128
    for c in (256, 512, 1024, 2048):
        if m_pad % c == 0 and _vmem_est(c) <= 12 * 1024 * 1024:
            tn = c
    # v7x: guarantee >=2 tiles along some parallel axis (2 TensorCores).
    if P * (co_pad // tco) == 1 and m_pad // tn < 2:
        for c in (1024, 512, 256, 128):
            if m_pad % c == 0 and m_pad // c >= 2:
                tn = c
                break

    grid = (P, co_pad // tco, m_pad // tn, kc_pad // tk)
    kernel = functools.partial(_mm_bias_act_kernel, activation=activation)

    flops = 2 * P * co_pad * kc_pad * m_pad
    transc = P * co_pad * m_pad if activation == "sigmoid" else 0
    bytes_acc = (P * co_pad * kc_pad + P * kc_pad * m_pad
                 + P * co_pad * m_pad) * 2 + co_pad * 4

    return pl.pallas_call(
        kernel,
        out_shape=jax.ShapeDtypeStruct((P, co_pad, m_pad), jnp.bfloat16),
        grid_spec=pltpu.PrefetchScalarGridSpec(
            num_scalar_prefetch=0,
            grid=grid,
            in_specs=[
                pl.BlockSpec((None, tco, tk), lambda p, i, j, k: (p, i, k)),
                pl.BlockSpec((None, tk, tn), lambda p, i, j, k: (p, k, j)),
                pl.BlockSpec((tco, 1), lambda p, i, j, k: (i, 0)),
            ],
            out_specs=pl.BlockSpec((None, tco, tn), lambda p, i, j, k: (p, i, j)),
            scratch_shapes=[pltpu.VMEM((tco, tn), jnp.float32)],
        ),
        compiler_params=pltpu.CompilerParams(
            dimension_semantics=("parallel", "parallel", "parallel", "arbitrary"),
            vmem_limit_bytes=48 * 1024 * 1024,
        ),
        cost_estimate=pl.CostEstimate(
            flops=flops, transcendentals=transc, bytes_accessed=bytes_acc),
    )(w_stack, a_stack, bias_col)


# ------------------------------------------------------------------- glue ----
def _first_layer(z, w_stack, bias_col, spec):
    """ConvTranspose2d(nz, C0, 4, 1, 0) on a 1x1 input == dense matmul."""
    cin, cout, k, _stride, _pad, act = spec
    N = z.shape[0]
    kc_pad = w_stack.shape[2]
    m_pad = _round_up(max(N, 1), 128)
    a = jnp.zeros((1, kc_pad, m_pad), jnp.bfloat16)
    a = a.at[0, :cin, :N].set(z.astype(jnp.bfloat16).T)
    y = matmul_bias_act(w_stack, a, bias_col, act)      # (1, co_pad, m_pad)
    y = y[0, :cout * k * k, :N].reshape(cout, k, k, N)  # rows = (co, oy, ox)
    return y.transpose(0, 3, 1, 2)                      # (Cout, N, 4, 4) bf16


def _stride2_layer(x, w_stack, bias_col, spec):
    """K=4, stride-2, pad-1 ConvTranspose2d via sub-pixel decomposition.

    x is channel-major (Cin, N, H, W) bf16; output (Cout, N, 2H, 2W) bf16.
    Each output parity (ry, rx) is a dense 2x2-tap conv over the 1-padded
    input; tap (dy, dx) reads padded pixel (qy+ry+dy, qx+rx+dx) and uses
    kernel element (3-ry-2*dy, 3-rx-2*dx).
    """
    cin, cout, _k, _stride, _pad, act = spec
    Cin, N, H, W = x.shape
    assert Cin == cin
    xp = jnp.pad(x, ((0, 0), (0, 0), (1, 1), (1, 1)))

    # TODO(synk): replace this slice/stack materialisation of A^T with
    # in-kernel shifted-window DMA on the padded activation (element-offset
    # index_map), to cut activation HBM traffic further; with the sub-pixel
    # decomposition it is already 4x smaller than the zero-dilated im2col.
    parities = []
    for ry in (0, 1):
        for rx in (0, 1):
            taps = [xp[:, :, ry + dy:ry + dy + H, rx + dx:rx + dx + W]
                    for dy in (0, 1) for dx in (0, 1)]
            parities.append(jnp.stack(taps, axis=0))    # (4, Cin, N, H, W)
    a = jnp.stack(parities, axis=0).reshape(4, 4 * Cin, N * H * W)

    kc, m = 4 * Cin, N * H * W
    kc_pad = w_stack.shape[2]
    m_pad = _round_up(m, 128)
    if kc_pad != kc or m_pad != m:
        a = jnp.pad(a, ((0, 0), (0, kc_pad - kc), (0, m_pad - m)))

    y = matmul_bias_act(w_stack, a, bias_col, act)      # (4, co_pad, m_pad)
    y = y[:, :cout, :m].reshape(2, 2, cout, N, H, W)
    # interleave parities: out[co, n, 2*qy+ry, 2*qx+rx]
    y = y.transpose(2, 3, 4, 0, 5, 1).reshape(cout, N, 2 * H, 2 * W)
    return y


# --------------------------------------------------------------- generator ---
def make_layer_specs(nz, ngf, out_width, nc, generator_activation):
    num_layers = np.log2(out_width) - 3
    assert np.mod(num_layers, 1) == 0
    num_layers = int(num_layers)
    channel_list = [ngf * 2 ** (i - 1) for i in range(num_layers + 1, 0, -1)]
    specs = [(nz, channel_list[0], 4, 1, 0, "relu")]
    for i in range(num_layers):
        specs.append((channel_list[i], channel_list[i + 1], 4, 2, 1, "relu"))
    final_act = generator_activation if generator_activation in ("sigmoid", "relu") else "none"
    specs.append((ngf, nc, 4, 2, 1, final_act))
    return specs


def init_params(key, layer_specs):
    params = []
    for (cin, cout, k, _, _, _) in layer_specs:
        key, kw, kb = jax.random.split(key, 3)
        fan = cin * k * k
        W = jax.random.normal(kw, (cin, cout, k, k), jnp.float32) / jnp.sqrt(fan)
        b = 0.01 * jax.random.normal(kb, (cout,), jnp.float32)
        params.append((W, b))
    return params


def prepare_params(params, layer_specs):
    """One-time weight prep (outside the forward pass): sub-pixel kernel
    extraction, zero-pad to tile multiples, bf16 cast.  Bias stays f32 and is
    applied in the kernel epilogue (not folded into the contraction)."""
    prepped = []
    for (Wt, b), (cin, cout, k, stride, pad, _act) in zip(params, layer_specs):
        assert k == 4
        if stride == 1:
            assert pad == 0
            rows = cout * k * k                       # rows = (co, oy, ox)
            co_pad = _round_up(rows, 16)
            kc_pad = _round_up(cin, 128)
            wm = Wt.transpose(1, 2, 3, 0).reshape(rows, cin)
            w = jnp.zeros((1, co_pad, kc_pad), jnp.float32)
            w = w.at[0, :rows, :cin].set(wm)
            bias = jnp.zeros((co_pad, 1), jnp.float32)
            bias = bias.at[:rows, 0].set(jnp.repeat(b, k * k))
        else:
            assert stride == 2 and pad == 1
            kc = 4 * cin
            co_pad = _round_up(cout, 16)
            kc_pad = _round_up(kc, 128)
            w = jnp.zeros((4, co_pad, kc_pad), jnp.float32)
            for ry in (0, 1):
                for rx in (0, 1):
                    sub = jnp.stack(
                        [jnp.stack(
                            [Wt[:, :, 3 - ry - 2 * dy, 3 - rx - 2 * dx].T
                             for dx in (0, 1)], axis=1)
                         for dy in (0, 1)], axis=1)     # (cout, dy, dx, cin)
                    w = w.at[2 * ry + rx, :cout, :kc].set(sub.reshape(cout, kc))
            bias = jnp.zeros((co_pad, 1), jnp.float32)
            bias = bias.at[:cout, 0].set(b)
        prepped.append((w.astype(jnp.bfloat16), bias))
    return prepped


def conv_generator_forward(prepped, layer_specs, inputs):
    # matches: assert len(input) == 1; noise = input[0].unsqueeze(2).unsqueeze(2)
    assert len(inputs) == 1
    z = inputs[0]
    z = z.reshape(z.shape[0], -1)
    # TODO(synk): at demo-scale (M <= 512 per layer) the whole generator could
    # be fused into a single pallas_call with resident weights to avoid
    # per-layer launch + glue overhead.
    x = None
    for i, ((w, bias), spec) in enumerate(zip(prepped, layer_specs)):
        if i == 0:
            x = _first_layer(z, w, bias, spec)
        else:
            x = _stride2_layer(x, w, bias, spec)
    # channel-major bf16 -> NCHW f32 only at the module boundary
    return x.transpose(1, 0, 2, 3).astype(jnp.float32)


# --------------------------------------------------------------- reference ---
def reference_forward(params, layer_specs, z):
    """Pure-XLA f32 reference with exact ConvTranspose2d semantics."""
    x = z[:, :, None, None].astype(jnp.float32)
    for (Wt, b), (_cin, _cout, k, s, p, act) in zip(params, layer_specs):
        rhs = jnp.flip(Wt, (2, 3)).transpose(1, 0, 2, 3)     # (Cout, Cin, K, K)
        x = jax.lax.conv_general_dilated(
            x, rhs, window_strides=(1, 1),
            padding=[(k - 1 - p, k - 1 - p)] * 2,
            lhs_dilation=(s, s),
            dimension_numbers=("NCHW", "OIHW", "NCHW"))
        x = x + b[None, :, None, None]
        if act == "relu":
            x = jax.nn.relu(x)
        elif act == "sigmoid":
            x = jax.nn.sigmoid(x)
    return x


# ------------------------------------------------------------------- main ----
if __name__ == "__main__":
    N, nz, ngf, nc, out_width = 2, 16, 8, 3, 16          # small DCGAN config
    generator_activation = "sigmoid"

    layer_specs = make_layer_specs(nz, ngf, out_width, nc, generator_activation)

    key = jax.random.PRNGKey(0)
    key_params, key_noise = jax.random.split(key)
    params = init_params(key_params, layer_specs)
    prepped = prepare_params(params, layer_specs)        # hoisted, runs once
    noise = jax.random.normal(key_noise, (N, nz), jnp.float32)

    @jax.jit
    def fwd(weights, z):
        return conv_generator_forward(weights, layer_specs, [z])

    out = jax.block_until_ready(fwd(prepped, noise))

    assert out.shape == (N, nc, out_width, out_width), out.shape
    assert bool(jnp.all(jnp.isfinite(out)))
    # sigmoid output range sanity
    assert bool(jnp.all(out >= 0.0)) and bool(jnp.all(out <= 1.0))

    # numerical check vs f32 XLA reference (bf16 operands -> loose tolerance)
    ref = jax.block_until_ready(
        jax.jit(lambda z: reference_forward(params, layer_specs, z))(noise))
    max_err = float(jnp.max(jnp.abs(out - ref)))
    assert max_err < 6e-2, f"max abs err vs reference = {max_err}"

    print("KERNEL_OK")
</pallas_src>

<mosaic_0001>
module attributes {stable_mosaic.version = 11 : i64} {
  func.func @_mm_bias_act_kernel(%arg0: i32, %arg1: i32, %arg2: i32, %arg3: i32, %arg4: memref<1x256x128xbf16, #tpu.memory_space<vmem>>, %arg5: memref<1x128x128xbf16, #tpu.memory_space<vmem>>, %arg6: memref<256x1xf32, #tpu.memory_space<vmem>>, %arg7: memref<1x256x128xbf16, #tpu.memory_space<vmem>>, %arg8: memref<256x128xf32, #tpu.memory_space<vmem>>) attributes {dimension_semantics = [#tpu.dimension_semantics<parallel>, #tpu.dimension_semantics<parallel>, #tpu.dimension_semantics<parallel>, #tpu.dimension_semantics<arbitrary>], iteration_bounds = array<i64: 1, 1, 1, 1>, scalar_prefetch = 0 : i64, scratch_operands = 1 : i64, tpu.core_type = #tpu.core_type<tc>, window_params = [{transform_indices = @transform_0, window_bounds = array<i64: 1, 256, 128>}, {transform_indices = @transform_1, window_bounds = array<i64: 1, 128, 128>}, {transform_indices = @transform_2, window_bounds = array<i64: 256, 1>}, {transform_indices = @transform_3, window_bounds = array<i64: 1, 256, 128>}]} {
    %c0_i32 = arith.constant 0 : i32
    %0 = arith.cmpi eq, %arg3, %c0_i32 : i32
    %1 = arith.extui %0 : i1 to i32
    %c0_i32_0 = arith.constant 0 : i32
    %2 = arith.cmpi ne, %1, %c0_i32_0 : i32
    scf.if %2 {
      %cst_12 = arith.constant 0.000000e+00 : f32
      %14 = vector.broadcast %cst_12 : f32 to vector<256x128xf32>
      %c0_13 = arith.constant 0 : index
      %c0_14 = arith.constant 0 : index
      %15 = vector.load %arg8[%c0_13, %c0_14] : memref<256x128xf32, #tpu.memory_space<vmem>>, vector<256x128xf32>
      tpu.vector_store %arg8[%c0_13, %c0_14], %14 {strides = array<i32>} : memref<256x128xf32, #tpu.memory_space<vmem>>, vector<256x128xf32>,
    } else {
    }
    %c0 = arith.constant 0 : index
    %c0_1 = arith.constant 0 : index
    %3 = vector.load %arg8[%c0, %c0_1] : memref<256x128xf32, #tpu.memory_space<vmem>>, vector<256x128xf32>
    %c0_2 = arith.constant 0 : index
    %c0_3 = arith.constant 0 : index
    %c0_4 = arith.constant 0 : index
    %4 = vector.load %arg4[%c0_2, %c0_3, %c0_4] : memref<1x256x128xbf16, #tpu.memory_space<vmem>>, vector<1x256x128xbf16>
    %5 = vector.shape_cast %4 : vector<1x256x128xbf16> to vector<256x128xbf16>
    %c0_5 = arith.constant 0 : index
    %c0_6 = arith.constant 0 : index
    %c0_7 = arith.constant 0 : index
    %6 = vector.load %arg5[%c0_5, %c0_6, %c0_7] : memref<1x128x128xbf16, #tpu.memory_space<vmem>>, vector<1x128x128xbf16>
    %7 = vector.shape_cast %6 : vector<1x128x128xbf16> to vector<128x128xbf16>
    %cst = arith.constant dense<0.000000e+00> : vector<256x128xf32>
    %8 = tpu.matmul %5, %7, %cst {dimension_numbers = #tpu.dot_dimension_numbers<[1], [0], [0], [1], [0, 0, 1, 1], [], []>} : vector<256x128xbf16>, vector<128x128xbf16>, vector<256x128xf32> -> vector<256x128xf32>
    %9 = arith.addf %3, %8 : vector<256x128xf32>
    %c0_8 = arith.constant 0 : index
    %c0_9 = arith.constant 0 : index
    %10 = vector.load %arg8[%c0_8, %c0_9] : memref<256x128xf32, #tpu.memory_space<vmem>>, vector<256x128xf32>
    tpu.vector_store %arg8[%c0_8, %c0_9], %9 {strides = array<i32>} : memref<256x128xf32, #tpu.memory_space<vmem>>, vector<256x128xf32>,
    %c0_i32_10 = arith.constant 0 : i32
    %11 = arith.cmpi eq, %arg3, %c0_i32_10 : i32
    %12 = arith.extui %11 : i1 to i32
    %c0_i32_11 = arith.constant 0 : i32
    %13 = arith.cmpi ne, %12, %c0_i32_11 : i32
    scf.if %13 {
      %c0_12 = arith.constant 0 : index
      %c0_13 = arith.constant 0 : index
      %14 = vector.load %arg8[%c0_12, %c0_13] : memref<256x128xf32, #tpu.memory_space<vmem>>, vector<256x128xf32>
      %c0_14 = arith.constant 0 : index
      %c0_15 = arith.constant 0 : index
      %15 = vector.load %arg6[%c0_14, %c0_15] : memref<256x1xf32, #tpu.memory_space<vmem>>, vector<256x1xf32>
      %16 = vector.broadcast %15 : vector<256x1xf32> to vector<256x128xf32>
      %17 = arith.addf %14, %16 : vector<256x128xf32>
      %cst_16 = arith.constant 0.000000e+00 : f32
      %18 = vector.broadcast %cst_16 : f32 to vector<256x128xf32>
      %19 = arith.maximumf %17, %18 : vector<256x128xf32>
      %20 = arith.truncf %19 : vector<256x128xf32> to vector<256x128xbf16>
      %c0_17 = arith.constant 0 : index
      %c0_18 = arith.constant 0 : index
      %c0_19 = arith.constant 0 : index
      %21 = vector.load %arg7[%c0_17, %c0_18, %c0_19] : memref<1x256x128xbf16, #tpu.memory_space<vmem>>, vector<1x256x128xbf16>
      %22 = vector.shape_cast %21 : vector<1x256x128xbf16> to vector<256x128xbf16>
      %23 = vector.shape_cast %20 : vector<256x128xbf16> to vector<1x256x128xbf16>
      tpu.vector_store %arg7[%c0_17, %c0_18, %c0_19], %23 {strides = array<i32>} : memref<1x256x128xbf16, #tpu.memory_space<vmem>>, vector<1x256x128xbf16>,
    } else {
    }
    return
  }
  func.func @transform_0(%arg0: i32, %arg1: i32, %arg2: i32, %arg3: i32) -> (i32, i32, i32) {
    %c0_i32 = arith.constant 0 : i32
    return %arg0, %arg1, %arg3 : i32, i32, i32
  }
  func.func @transform_1(%arg0: i32, %arg1: i32, %arg2: i32, %arg3: i32) -> (i32, i32, i32) {
    %c0_i32 = arith.constant 0 : i32
    return %arg0, %arg3, %arg2 : i32, i32, i32
  }
  func.func @transform_2(%arg0: i32, %arg1: i32, %arg2: i32, %arg3: i32) -> (i32, i32) {
    %c0_i32 = arith.constant 0 : i32
    %c0_i32_0 = arith.constant 0 : i32
    return %arg1, %c0_i32 : i32, i32
  }
  func.func @transform_3(%arg0: i32, %arg1: i32, %arg2: i32, %arg3: i32) -> (i32, i32, i32) {
    %c0_i32 = arith.constant 0 : i32
    return %arg0, %arg1, %arg2 : i32, i32, i32
  }
}

module attributes {stable_mosaic.version = 11 : i64} {
  func.func @_mm_bias_act_kernel(%arg0: i32, %arg1: i32, %arg2: i32, %arg3: i32, %arg4: memref<1x16x128xbf16, #tpu.memory_space<vmem>>, %arg5: memref<1x128x128xbf16, #tpu.memory_space<vmem>>, %arg6: memref<16x1xf32, #tpu.memory_space<vmem>>, %arg7: memref<1x16x128xbf16, #tpu.memory_space<vmem>>, %arg8: memref<16x128xf32, #tpu.memory_space<vmem>>) attributes {dimension_semantics = [#tpu.dimension_semantics<parallel>, #tpu.dimension_semantics<parallel>, #tpu.dimension_semantics<parallel>, #tpu.dimension_semantics<arbitrary>], iteration_bounds = array<i64: 4, 1, 1, 1>, scalar_prefetch = 0 : i64, scratch_operands = 1 : i64, tpu.core_type = #tpu.core_type<tc>, window_params = [{transform_indices = @transform_0, window_bounds = array<i64: 1, 16, 128>}, {transform_indices = @transform_1, window_bounds = array<i64: 1, 128, 128>}, {transform_indices = @transform_2, window_bounds = array<i64: 16, 1>}, {transform_indices = @transform_3, window_bounds = array<i64: 1, 16, 128>}]} {
    %c0_i32 = arith.constant 0 : i32
    %0 = arith.cmpi eq, %arg3, %c0_i32 : i32
    %1 = arith.extui %0 : i1 to i32
    %c0_i32_0 = arith.constant 0 : i32
    %2 = arith.cmpi ne, %1, %c0_i32_0 : i32
    scf.if %2 {
      %cst_12 = arith.constant 0.000000e+00 : f32
      %14 = vector.broadcast %cst_12 : f32 to vector<16x128xf32>
      %c0_13 = arith.constant 0 : index
      %c0_14 = arith.constant 0 : index
      %15 = vector.load %arg8[%c0_13, %c0_14] : memref<16x128xf32, #tpu.memory_space<vmem>>, vector<16x128xf32>
      tpu.vector_store %arg8[%c0_13, %c0_14], %14 {strides = array<i32>} : memref<16x128xf32, #tpu.memory_space<vmem>>, vector<16x128xf32>,
    } else {
    }
    %c0 = arith.constant 0 : index
    %c0_1 = arith.constant 0 : index
    %3 = vector.load %arg8[%c0, %c0_1] : memref<16x128xf32, #tpu.memory_space<vmem>>, vector<16x128xf32>
    %c0_2 = arith.constant 0 : index
    %c0_3 = arith.constant 0 : index
    %c0_4 = arith.constant 0 : index
    %4 = vector.load %arg4[%c0_2, %c0_3, %c0_4] : memref<1x16x128xbf16, #tpu.memory_space<vmem>>, vector<1x16x128xbf16>
    %5 = vector.shape_cast %4 : vector<1x16x128xbf16> to vector<16x128xbf16>
    %c0_5 = arith.constant 0 : index
    %c0_6 = arith.constant 0 : index
    %c0_7 = arith.constant 0 : index
    %6 = vector.load %arg5[%c0_5, %c0_6, %c0_7] : memref<1x128x128xbf16, #tpu.memory_space<vmem>>, vector<1x128x128xbf16>
    %7 = vector.shape_cast %6 : vector<1x128x128xbf16> to vector<128x128xbf16>
    %cst = arith.constant dense<0.000000e+00> : vector<16x128xf32>
    %8 = tpu.matmul %5, %7, %cst {dimension_numbers = #tpu.dot_dimension_numbers<[1], [0], [0], [1], [0, 0, 1, 1], [], []>} : vector<16x128xbf16>, vector<128x128xbf16>, vector<16x128xf32> -> vector<16x128xf32>
    %9 = arith.addf %3, %8 : vector<16x128xf32>
    %c0_8 = arith.constant 0 : index
    %c0_9 = arith.constant 0 : index
    %10 = vector.load %arg8[%c0_8, %c0_9] : memref<16x128xf32, #tpu.memory_space<vmem>>, vector<16x128xf32>
    tpu.vector_store %arg8[%c0_8, %c0_9], %9 {strides = array<i32>} : memref<16x128xf32, #tpu.memory_space<vmem>>, vector<16x128xf32>,
    %c0_i32_10 = arith.constant 0 : i32
    %11 = arith.cmpi eq, %arg3, %c0_i32_10 : i32
    %12 = arith.extui %11 : i1 to i32
    %c0_i32_11 = arith.constant 0 : i32
    %13 = arith.cmpi ne, %12, %c0_i32_11 : i32
    scf.if %13 {
      %c0_12 = arith.constant 0 : index
      %c0_13 = arith.constant 0 : index
      %14 = vector.load %arg8[%c0_12, %c0_13] : memref<16x128xf32, #tpu.memory_space<vmem>>, vector<16x128xf32>
      %c0_14 = arith.constant 0 : index
      %c0_15 = arith.constant 0 : index
      %15 = vector.load %arg6[%c0_14, %c0_15] : memref<16x1xf32, #tpu.memory_space<vmem>>, vector<16x1xf32>
      %16 = vector.broadcast %15 : vector<16x1xf32> to vector<16x128xf32>
      %17 = arith.addf %14, %16 : vector<16x128xf32>
      %cst_16 = arith.constant 0.000000e+00 : f32
      %18 = vector.broadcast %cst_16 : f32 to vector<16x128xf32>
      %19 = arith.maximumf %17, %18 : vector<16x128xf32>
      %20 = arith.truncf %19 : vector<16x128xf32> to vector<16x128xbf16>
      %c0_17 = arith.constant 0 : index
      %c0_18 = arith.constant 0 : index
      %c0_19 = arith.constant 0 : index
      %21 = vector.load %arg7[%c0_17, %c0_18, %c0_19] : memref<1x16x128xbf16, #tpu.memory_space<vmem>>, vector<1x16x128xbf16>
      %22 = vector.shape_cast %21 : vector<1x16x128xbf16> to vector<16x128xbf16>
      %23 = vector.shape_cast %20 : vector<16x128xbf16> to vector<1x16x128xbf16>
      tpu.vector_store %arg7[%c0_17, %c0_18, %c0_19], %23 {strides = array<i32>} : memref<1x16x128xbf16, #tpu.memory_space<vmem>>, vector<1x16x128xbf16>,
    } else {
    }
    return
  }
  func.func @transform_0(%arg0: i32, %arg1: i32, %arg2: i32, %arg3: i32) -> (i32, i32, i32) {
    %c0_i32 = arith.constant 0 : i32
    return %arg0, %arg1, %arg3 : i32, i32, i32
  }
  func.func @transform_1(%arg0: i32, %arg1: i32, %arg2: i32, %arg3: i32) -> (i32, i32, i32) {
    %c0_i32 = arith.constant 0 : i32
    return %arg0, %arg3, %arg2 : i32, i32, i32
  }
  func.func @transform_2(%arg0: i32, %arg1: i32, %arg2: i32, %arg3: i32) -> (i32, i32) {
    %c0_i32 = arith.constant 0 : i32
    %c0_i32_0 = arith.constant 0 : i32
    return %arg1, %c0_i32 : i32, i32
  }
  func.func @transform_3(%arg0: i32, %arg1: i32, %arg2: i32, %arg3: i32) -> (i32, i32, i32) {
    %c0_i32 = arith.constant 0 : i32
    return %arg0, %arg1, %arg2 : i32, i32, i32
  }
}

module attributes {stable_mosaic.version = 11 : i64} {
  func.func @_mm_bias_act_kernel(%arg0: i32, %arg1: i32, %arg2: i32, %arg3: i32, %arg4: memref<1x16x128xbf16, #tpu.memory_space<vmem>>, %arg5: memref<1x128x128xbf16, #tpu.memory_space<vmem>>, %arg6: memref<16x1xf32, #tpu.memory_space<vmem>>, %arg7: memref<1x16x128xbf16, #tpu.memory_space<vmem>>, %arg8: memref<16x128xf32, #tpu.memory_space<vmem>>) attributes {dimension_semantics = [#tpu.dimension_semantics<parallel>, #tpu.dimension_semantics<parallel>, #tpu.dimension_semantics<parallel>, #tpu.dimension_semantics<arbitrary>], iteration_bounds = array<i64: 4, 1, 1, 1>, scalar_prefetch = 0 : i64, scratch_operands = 1 : i64, tpu.core_type = #tpu.core_type<tc>, window_params = [{transform_indices = @transform_0, window_bounds = array<i64: 1, 16, 128>}, {transform_indices = @transform_1, window_bounds = array<i64: 1, 128, 128>}, {transform_indices = @transform_2, window_bounds = array<i64: 16, 1>}, {transform_indices = @transform_3, window_bounds = array<i64: 1, 16, 128>}]} {
    %c0_i32 = arith.constant 0 : i32
    %0 = arith.cmpi eq, %arg3, %c0_i32 : i32
    %1 = arith.extui %0 : i1 to i32
    %c0_i32_0 = arith.constant 0 : i32
    %2 = arith.cmpi ne, %1, %c0_i32_0 : i32
    scf.if %2 {
      %cst_12 = arith.constant 0.000000e+00 : f32
      %14 = vector.broadcast %cst_12 : f32 to vector<16x128xf32>
      %c0_13 = arith.constant 0 : index
      %c0_14 = arith.constant 0 : index
      %15 = vector.load %arg8[%c0_13, %c0_14] : memref<16x128xf32, #tpu.memory_space<vmem>>, vector<16x128xf32>
      tpu.vector_store %arg8[%c0_13, %c0_14], %14 {strides = array<i32>} : memref<16x128xf32, #tpu.memory_space<vmem>>, vector<16x128xf32>,
    } else {
    }
    %c0 = arith.constant 0 : index
    %c0_1 = arith.constant 0 : index
    %3 = vector.load %arg8[%c0, %c0_1] : memref<16x128xf32, #tpu.memory_space<vmem>>, vector<16x128xf32>
    %c0_2 = arith.constant 0 : index
    %c0_3 = arith.constant 0 : index
    %c0_4 = arith.constant 0 : index
    %4 = vector.load %arg4[%c0_2, %c0_3, %c0_4] : memref<1x16x128xbf16, #tpu.memory_space<vmem>>, vector<1x16x128xbf16>
    %5 = vector.shape_cast %4 : vector<1x16x128xbf16> to vector<16x128xbf16>
    %c0_5 = arith.constant 0 : index
    %c0_6 = arith.constant 0 : index
    %c0_7 = arith.constant 0 : index
    %6 = vector.load %arg5[%c0_5, %c0_6, %c0_7] : memref<1x128x128xbf16, #tpu.memory_space<vmem>>, vector<1x128x128xbf16>
    %7 = vector.shape_cast %6 : vector<1x128x128xbf16> to vector<128x128xbf16>
    %cst = arith.constant dense<0.000000e+00> : vector<16x128xf32>
    %8 = tpu.matmul %5, %7, %cst {dimension_numbers = #tpu.dot_dimension_numbers<[1], [0], [0], [1], [0, 0, 1, 1], [], []>} : vector<16x128xbf16>, vector<128x128xbf16>, vector<16x128xf32> -> vector<16x128xf32>
    %9 = arith.addf %3, %8 : vector<16x128xf32>
    %c0_8 = arith.constant 0 : index
    %c0_9 = arith.constant 0 : index
    %10 = vector.load %arg8[%c0_8, %c0_9] : memref<16x128xf32, #tpu.memory_space<vmem>>, vector<16x128xf32>
    tpu.vector_store %arg8[%c0_8, %c0_9], %9 {strides = array<i32>} : memref<16x128xf32, #tpu.memory_space<vmem>>, vector<16x128xf32>,
    %c0_i32_10 = arith.constant 0 : i32
    %11 = arith.cmpi eq, %arg3, %c0_i32_10 : i32
    %12 = arith.extui %11 : i1 to i32
    %c0_i32_11 = arith.constant 0 : i32
    %13 = arith.cmpi ne, %12, %c0_i32_11 : i32
    scf.if %13 {
      %c0_12 = arith.constant 0 : index
      %c0_13 = arith.constant 0 : index
      %14 = vector.load %arg8[%c0_12, %c0_13] : memref<16x128xf32, #tpu.memory_space<vmem>>, vector<16x128xf32>
      %c0_14 = arith.constant 0 : index
      %c0_15 = arith.constant 0 : index
      %15 = vector.load %arg6[%c0_14, %c0_15] : memref<16x1xf32, #tpu.memory_space<vmem>>, vector<16x1xf32>
      %16 = vector.broadcast %15 : vector<16x1xf32> to vector<16x128xf32>
      %17 = arith.addf %14, %16 : vector<16x128xf32>
      %18 = arith.negf %17 : vector<16x128xf32>
      %19 = math.exp %18 : vector<16x128xf32>
      %cst_16 = arith.constant 1.000000e+00 : f32
      %20 = vector.broadcast %cst_16 : f32 to vector<16x128xf32>
      %21 = arith.addf %20, %19 : vector<16x128xf32>
      %22 = arith.divf %20, %21 : vector<16x128xf32>
      %23 = arith.truncf %22 : vector<16x128xf32> to vector<16x128xbf16>
      %c0_17 = arith.constant 0 : index
      %c0_18 = arith.constant 0 : index
      %c0_19 = arith.constant 0 : index
      %24 = vector.load %arg7[%c0_17, %c0_18, %c0_19] : memref<1x16x128xbf16, #tpu.memory_space<vmem>>, vector<1x16x128xbf16>
      %25 = vector.shape_cast %24 : vector<1x16x128xbf16> to vector<16x128xbf16>
      %26 = vector.shape_cast %23 : vector<16x128xbf16> to vector<1x16x128xbf16>
      tpu.vector_store %arg7[%c0_17, %c0_18, %c0_19], %26 {strides = array<i32>} : memref<1x16x128xbf16, #tpu.memory_space<vmem>>, vector<1x16x128xbf16>,
    } else {
    }
    return
  }
  func.func @transform_0(%arg0: i32, %arg1: i32, %arg2: i32, %arg3: i32) -> (i32, i32, i32) {
    %c0_i32 = arith.constant 0 : i32
    return %arg0, %arg1, %arg3 : i32, i32, i32
  }
  func.func @transform_1(%arg0: i32, %arg1: i32, %arg2: i32, %arg3: i32) -> (i32, i32, i32) {
    %c0_i32 = arith.constant 0 : i32
    return %arg0, %arg3, %arg2 : i32, i32, i32
  }
  func.func @transform_2(%arg0: i32, %arg1: i32, %arg2: i32, %arg3: i32) -> (i32, i32) {
    %c0_i32 = arith.constant 0 : i32
    %c0_i32_0 = arith.constant 0 : i32
    return %arg1, %c0_i32 : i32, i32
  }
  func.func @transform_3(%arg0: i32, %arg1: i32, %arg2: i32, %arg3: i32) -> (i32, i32, i32) {
    %c0_i32 = arith.constant 0 : i32
    return %arg0, %arg1, %arg2 : i32, i32, i32
  }
}

</mosaic_0001>

<llo_original>
// kernel: fwd.4
$region0: #{fwd.4}
  #allocation0 [shape = 'u32[]', space=smem, size = 0x4, offset = 0x4, fixed_abs, tag = 'smem constant byte address 0x4 - core index']
  #allocation1 [shape = 'u32[144,128]{1,0:T(1,128)}', space=vmem, size = 0x12000, scoped, tag = 'internal scratch']
  #allocation2 [shape = 'f32[16,128]{1,0:T(8,128)}', space=vmem, size = 0x2000, scoped, tag = 'scratch operand']
  %s0 = inlined_call_operand.vmem [shape: bf16[4,16,128], index: 0, kind: input, shape index: {}]
  %s1 = inlined_call_operand.vmem [shape: bf16[4,128,128], index: 1, kind: input, shape index: {}]
  %s2 = inlined_call_operand.vmem [shape: f32[16,1], index: 2, kind: input, shape index: {}]
  %s3 = inlined_call_operand.vmem [shape: bf16[4,16,128], index: 3, kind: output, shape index: {}]
  %s4 = sld [smem:[#allocation0]]
  $region53: #{fwd.4} parent=0
    _
  %s6 = ssub.s32 1, %s4
  %s7 = scalar_select 0, %s6, %s4
  loop: start=0, step=1, limit=6
  $region2: #{fwd.4} parent=0 // loop_pre_header
    _
  $region3: #{fwd.4} parent=0 // loop_header
    %s9 = sphi 0, %s13
    %p10 = scmp.ge.s32.totalorder %s9, 6
    %s16 = sphi 0, %s42
    %s17 = sphi 0, %s38
    %s18 = sphi 0, %s34
    %s19 = sphi 0, %s30
    %s20 = sphi 0, %s16
    %s21 = sphi 0, %s17
    %s22 = sphi 0, %s18
    %s23 = sphi 0, %s19
    %s24 = sphi 0, %s20
    %s25 = sphi 0, %s21
    %s26 = sphi 0, %s22
    %s27 = sphi 0, %s23
    %s49 = sphi 0, %s51
    %s52 = sphi 0, %s49
    %s53 = sphi 0, %s52
    %s69 = sphi 0, %s53
    %s79 = sphi 0, %s81
    %s82 = sphi 0, %s79
    %s83 = sphi 0, %s82
    %s99 = sphi 0, %s83
    %s105 = sphi 0, %s107
    %s108 = sphi 0, %s105
    %s109 = sphi 0, %s108
    %s125 = sphi 0, %s109
    %s135 = sphi 0, %s137
    %s138 = sphi 0, %s135
    %s139 = sphi 0, %s138
    %s155 = sphi 0, %s139
  $region4: #{fwd.4} parent=0 // loop_header_branch
    %12 = sbr.rel (%p10) target = $region8
  $region5: #{fwd.4} parent=0 // loop_body
    %s14 = ssub.s32 %s9, 1
    %s15 = ssub.s32 %s9, 2
    %s28 = sadd.s32 1, %s19
    %p29 = scmp.ge.s32.totalorder %s28, 1
    %s30 = scalar_select %p29, 0, %s28
    %s31 = sadd.s32 1, %s18
    %s32 = scalar_select %p29, %s31, %s18
    %p33 = scmp.ge.s32.totalorder %s32, 1
    %s34 = scalar_select %p33, 0, %s32
    %s35 = sadd.s32 1, %s17
    %s36 = scalar_select %p33, %s35, %s17
    %p37 = scmp.ge.s32.totalorder %s36, 1
    %s38 = scalar_select %p37, 0, %s36
    %s39 = sadd.s32 1, %s16
    %s40 = scalar_select %p37, %s39, %s16
    %p41 = scmp.ge.s32.totalorder %s40, 4
    %s42 = scalar_select %p41, 0, %s40
    %s43 = ssub.s32 %s16, %s42
    %s44 = ssub.s32 %s17, %s38
    %s45 = sor.u32 %s43, %s44
    %s46 = ssub.s32 %s19, %s30
    %s47 = sor.u32 %s45, %s46
    %p48 = scmp.eq.s32.totalorder %s47, 0
    %s50 = sadd.s32 %s49, 1
    %s51 = scalar_select %p48, %s49, %s50
    %p54 = pneg %p48
    %p55 = scmp.eq.s32.totalorder %s9, 3
    %p56 = por %p54, %p55
    %p57 = scmp.ne.s32.totalorder %s49, %s52
    %p58 = scmp.eq.s32.totalorder %s9, 0
    %p59 = por %p57, %p58
    %p60 = scmp.ne.s32.totalorder %s49, %s52
    %p61 = scmp.eq.s32.totalorder %s14, 3
    %p62 = por %p60, %p61
    %p63 = scmp.ne.s32.totalorder %s52, %s53
    %p64 = scmp.eq.s32.totalorder %s14, 0
    %p65 = por %p63, %p64
    %p66 = scmp.ne.s32.totalorder %s52, %s53
    %p67 = scmp.eq.s32.totalorder %s15, 3
    %p68 = por %p66, %p67
    %p70 = scmp.ne.s32.totalorder %s53, %s69
    %p71 = scmp.eq.s32.totalorder %s15, 0
    %p72 = por %p70, %p71
    %s73 = ssub.s32 %s16, %s42
    %s74 = ssub.s32 %s19, %s30
    %s75 = sor.u32 %s73, %s74
    %s76 = ssub.s32 %s18, %s34
    %s77 = sor.u32 %s75, %s76
    %p78 = scmp.eq.s32.totalorder %s77, 0
    %s80 = sadd.s32 %s79, 1
    %s81 = scalar_select %p78, %s79, %s80
    %p84 = pneg %p78
    %p85 = scmp.eq.s32.totalorder %s9, 3
    %p86 = por %p84, %p85
    %p87 = scmp.ne.s32.totalorder %s79, %s82
    %p88 = scmp.eq.s32.totalorder %s9, 0
    %p89 = por %p87, %p88
    %p90 = scmp.ne.s32.totalorder %s79, %s82
    %p91 = scmp.eq.s32.totalorder %s14, 3
    %p92 = por %p90, %p91
    %p93 = scmp.ne.s32.totalorder %s82, %s83
    %p94 = scmp.eq.s32.totalorder %s14, 0
    %p95 = por %p93, %p94
    %p96 = scmp.ne.s32.totalorder %s82, %s83
    %p97 = scmp.eq.s32.totalorder %s15, 3
    %p98 = por %p96, %p97
    %p100 = scmp.ne.s32.totalorder %s83, %s99
    %p101 = scmp.eq.s32.totalorder %s15, 0
    %p102 = por %p100, %p101
    %s103 = ssub.s32 %s17, %s38
    %p104 = scmp.eq.s32.totalorder %s103, 0
    %s106 = sadd.s32 %s105, 1
    %s107 = scalar_select %p104, %s105, %s106
    %p110 = pneg %p104
    %p111 = scmp.eq.s32.totalorder %s9, 3
    %p112 = por %p110, %p111
    %p113 = scmp.ne.s32.totalorder %s105, %s108
    %p114 = scmp.eq.s32.totalorder %s9, 0
    %p115 = por %p113, %p114
    %p116 = scmp.ne.s32.totalorder %s105, %s108
    %p117 = scmp.eq.s32.totalorder %s14, 3
    %p118 = por %p116, %p117
    %p119 = scmp.ne.s32.totalorder %s108, %s109
    %p120 = scmp.eq.s32.totalorder %s14, 0
    %p121 = por %p119, %p120
    %p122 = scmp.ne.s32.totalorder %s108, %s109
    %p123 = scmp.eq.s32.totalorder %s15, 3
    %p124 = por %p122, %p123
    %p126 = scmp.ne.s32.totalorder %s109, %s125
    %p127 = scmp.eq.s32.totalorder %s15, 0
    %p128 = por %p126, %p127
    %s129 = ssub.s32 %s16, %s42
    %s130 = ssub.s32 %s17, %s38
    %s131 = sor.u32 %s129, %s130
    %s132 = ssub.s32 %s18, %s34
    %s133 = sor.u32 %s131, %s132
    %p134 = scmp.eq.s32.totalorder %s133, 0
    %s136 = sadd.s32 %s135, 1
    %s137 = scalar_select %p134, %s135, %s136
    %p140 = pneg %p134
    %p141 = scmp.eq.s32.totalorder %s9, 3
    %p142 = por %p140, %p141
    %p143 = scmp.ne.s32.totalorder %s135, %s138
    %p144 = scmp.eq.s32.totalorder %s9, 0
    %p145 = por %p143, %p144
    %p146 = scmp.ne.s32.totalorder %s135, %s138
    %p147 = scmp.eq.s32.totalorder %s14, 3
    %p148 = por %p146, %p147
    %p149 = scmp.ne.s32.totalorder %s138, %s139
    %p150 = scmp.eq.s32.totalorder %s14, 0
    %p151 = por %p149, %p150
    %p152 = scmp.ne.s32.totalorder %s138, %s139
    %p153 = scmp.eq.s32.totalorder %s15, 3
    %p154 = por %p152, %p153
    %p156 = scmp.ne.s32.totalorder %s139, %s155
    %p157 = scmp.eq.s32.totalorder %s15, 0
    %p158 = por %p156, %p157
    %p159 = scmp.le.s32.totalorder 1, %s9
    %p160 = scmp.lt.s32.totalorder %s9, 5
    %p161 = pnand %p159, %p160
    %p162 = pneg %p161
    // Predicated region
    $region9: #{fwd.4} parent=5 // pred_check
      _
    $region10: #{fwd.4} parent=5 // pred_check_branch
      %164 = sbr.rel (%p161) target = $region12
    $region11: #{fwd.4} parent=5 // pred_region
      %s165 = ssub.s32 %s9, 1
      // Predicated region
      $region13: #{fwd.4} parent=11 // pred_check
        %p166 = pneg %p121
      $region14: #{fwd.4} parent=11 // pred_check_branch
        %168 = sbr.rel (%p166) target = $region16
      $region15: #{fwd.4} parent=11 // pred_region
        %s169 = smul.u32 2, %s21
        %p170 = scmp.lt.s32.totalorder %s169, 1
        %s171 = scalar_select %p170, %s169, 1
        %s172 = smul.addr %s171, 8
        %s173 = scalar_lea.vmem %s2, %s172
        %s174 = smul.u32 2, %s21
      $region16: #{fwd.4} parent=11 // pred_fallthru
        _
    $region12: #{fwd.4} parent=5 // pred_fallthru
      _
    %p175 = scmp.lt.s32.totalorder %s9, 4
    // Predicated region
    $region17: #{fwd.4} parent=5 // pred_check
      %p176 = pneg %p175
    $region18: #{fwd.4} parent=5 // pred_check_branch
      %178 = sbr.rel (%p176) target = $region20
    $region19: #{fwd.4} parent=5 // pred_region
      // Predicated region
      $region21: #{fwd.4} parent=19 // pred_check
        %p179 = pneg %p59
      $region22: #{fwd.4} parent=19 // pred_check_branch
        %181 = sbr.rel (%p179) target = $region24
      $region23: #{fwd.4} parent=19 // pred_region
        %s182 = smul.u32 2, %s17
        %p183 = scmp.lt.s32.totalorder %s16, 3
        %s184 = scalar_select %p183, %s16, 3
        %p185 = scmp.lt.s32.totalorder %s182, 1
        %s186 = scalar_select %p185, %s182, 1
        %p187 = scmp.lt.s32.totalorder %s19, 0
        %s188 = scalar_select %p187, %s19, 0
        %s189 = sadd.s32 %s188, %s186
        %s190 = smul.addr %s184, 2
        %s191 = sadd.s32 %s189, %s190
        %s192 = smul.addr %s191, 4
        %s193 = scalar_lea.vmem %s0, %s192
        %s194 = smul.u32 2, %s17
      $region24: #{fwd.4} parent=19 // pred_fallthru
        _
      // Predicated region
      $region25: #{fwd.4} parent=19 // pred_check
        %p195 = pneg %p89
      $region26: #{fwd.4} parent=19 // pred_check_branch
        %197 = sbr.rel (%p195) target = $region28
      $region27: #{fwd.4} parent=19 // pred_region
        %s198 = smul.u32 16, %s19
        %p199 = scmp.lt.s32.totalorder %s16, 3
        %s200 = scalar_select %p199, %s16, 3
        %p201 = scmp.lt.s32.totalorder %s198, 15
        %s202 = scalar_select %p201, %s198, 15
        %p203 = scmp.lt.s32.totalorder %s18, 0
        %s204 = scalar_select %p203, %s18, 0
        %s205 = sadd.s32 %s204, %s202
        %s206 = smul.addr %s200, 16
        %s207 = sadd.s32 %s205, %s206
        %s208 = smul.addr %s207, 4
        %s209 = scalar_lea.vmem %s1, %s208
        %s210 = smul.u32 16, %s19
      $region28: #{fwd.4} parent=19 // pred_fallthru
        _
    $region20: #{fwd.4} parent=5 // pred_fallthru
      _
    %p211 = scmp.le.s32.totalorder 1, %s9
    %p212 = scmp.lt.s32.totalorder %s9, 5
    %p213 = pnand %p211, %p212
    %p214 = pneg %p213
    // Predicated region
    $region29: #{fwd.4} parent=5 // pred_check
      _
    $region30: #{fwd.4} parent=5 // pred_check_branch
      %216 = sbr.rel (%p213) target = $region32
    $region31: #{fwd.4} parent=5 // pred_region
      %s217 = ssub.s32 %s9, 1
      %s218 = smul.u32 2, %s21
      %p219 = scmp.lt.s32.totalorder %s20, 3
      %s220 = scalar_select %p219, %s20, 3
      %p221 = scmp.lt.s32.totalorder %s218, 1
      %s222 = scalar_select %p221, %s218, 1
      %p223 = scmp.lt.s32.totalorder %s23, 0
      %s224 = scalar_select %p223, %s23, 0
      %s225 = sadd.s32 %s224, %s222
      %s226 = smul.addr %s220, 2
      %s227 = sadd.s32 %s225, %s226
      %s228 = smul.addr %s227, 4
      %s229 = scalar_lea.vmem %s0, %s228
      %p230 = pneg %p65
      %p231 = pneg %p62
      %s232 = smul.u32 16, %s23
      %p233 = scmp.lt.s32.totalorder %s20, 3
      %s234 = scalar_select %p233, %s20, 3
      %p235 = scmp.lt.s32.totalorder %s232, 15
      %s236 = scalar_select %p235, %s232, 15
      %p237 = scmp.lt.s32.totalorder %s22, 0
      %s238 = scalar_select %p237, %s22, 0
      %s239 = sadd.s32 %s238, %s236
      %s240 = smul.addr %s234, 16
      %s241 = sadd.s32 %s239, %s240
      %s242 = smul.addr %s241, 4
      %s243 = scalar_lea.vmem %s1, %s242
      %p244 = pneg %p95
      %p245 = pneg %p92
      %s246 = smul.u32 2, %s21
      %p247 = scmp.lt.s32.totalorder %s246, 1
      %s248 = scalar_select %p247, %s246, 1
      %s249 = smul.addr %s248, 8
      %s250 = scalar_lea.vmem %s2, %s249
      %p251 = pneg %p121
      %p252 = pneg %p118
      %p253 = pneg %p151
      %p254 = pneg %p148
      %s255 = smul.u32 2, %s21
      %p256 = scmp.lt.s32.totalorder %s20, 3
      %s257 = scalar_select %p256, %s20, 3
      %p258 = scmp.lt.s32.totalorder %s255, 1
      %s259 = scalar_select %p258, %s255, 1
      %p260 = scmp.lt.s32.totalorder %s22, 0
      %s261 = scalar_select %p260, %s22, 0
      %s262 = sadd.s32 %s261, %s259
      %s263 = smul.addr %s257, 2
      %s264 = sadd.s32 %s262, %s263
      %s265 = smul.addr %s264, 4
      %s266 = scalar_lea.vmem %s3, %s265
      %s267 = smul.u32 2, %s21
      %p268 = scmp.lt.s32.totalorder %s20, 3
      %s269 = scalar_select %p268, %s20, 3
      %p270 = scmp.lt.s32.totalorder %s267, 1
      %s271 = scalar_select %p270, %s267, 1
      %p272 = scmp.lt.s32.totalorder %s23, 0
      %s273 = scalar_select %p272, %s23, 0
      %s274 = sadd.s32 %s273, %s271
      %s275 = smul.addr %s269, 2
      %s276 = sadd.s32 %s274, %s275
      %s277 = smul.addr %s276, 4
      %s278 = scalar_lea.vmem %s0, %s277
      %s279 = smul.u32 2, %s21
      %s280 = smul.u32 16, %s23
      %p281 = scmp.lt.s32.totalorder %s20, 3
      %s282 = scalar_select %p281, %s20, 3
      %p283 = scmp.lt.s32.totalorder %s280, 15
      %s284 = scalar_select %p283, %s280, 15
      %p285 = scmp.lt.s32.totalorder %s22, 0
      %s286 = scalar_select %p285, %s22, 0
      %s287 = sadd.s32 %s286, %s284
      %s288 = smul.addr %s282, 16
      %s289 = sadd.s32 %s287, %s288
      %s290 = smul.addr %s289, 4
      %s291 = scalar_lea.vmem %s1, %s290
      %s292 = smul.u32 16, %s23
      %s293 = smul.u32 2, %s21
      %p294 = scmp.lt.s32.totalorder %s293, 1
      %s295 = scalar_select %p294, %s293, 1
      %s296 = smul.addr %s295, 8
      %s297 = scalar_lea.vmem %s2, %s296
      %s298 = smul.u32 2, %s21
      %s299 = smul.u32 2, %s21
      %p300 = scmp.lt.s32.totalorder %s20, 3
      %s301 = scalar_select %p300, %s20, 3
      %p302 = scmp.lt.s32.totalorder %s299, 1
      %s303 = scalar_select %p302, %s299, 1
      %p304 = scmp.lt.s32.totalorder %s22, 0
      %s305 = scalar_select %p304, %s22, 0
      %s306 = sadd.s32 %s305, %s303
      %s307 = smul.addr %s301, 2
      %s308 = sadd.s32 %s306, %s307
      %s309 = smul.addr %s308, 4
      %s310 = scalar_lea.vmem %s3, %s309
      %s311 = smul.u32 2, %s21
      %p313 = scmp.eq.s32.totalorder %s23, 0
      // Predicated region
      $region33: #{fwd.4} parent=31 // pred_check
        %p314 = pneg %p313
      $region34: #{fwd.4} parent=31 // pred_check_branch
        %316 = sbr.rel (%p314) target = $region36
      $region35: #{fwd.4} parent=31 // pred_region
        %317 = vst [vmem:[#allocation2] sm:$0xff] 0.0
        %318 = vst [vmem:[#allocation2 + $0x8] sm:$0xff] 0.0
      $region36: #{fwd.4} parent=31 // pred_fallthru
        _
      %v319 = vld [vmem:[#allocation2] sm:$0xff]
      %v320 = vld [vmem:[#allocation2 + $0x8] sm:$0xff]
      %v321 = vld [vmem:[%s278] sm:$0xf]
      %v322 = vld [vmem:[%s278 + $0x4] sm:$0xf]
      %v323 = vld [vmem:[%s291] sm:$0xf]
      %v324 = vld [vmem:[%s291 + $0x4] sm:$0xf]
      %v325 = vld [vmem:[%s291 + $0x8] sm:$0xf]
      %v326 = vld [vmem:[%s291 + $0xc] sm:$0xf]
      %v327 = vld [vmem:[%s291 + $0x10] sm:$0xf]
      %v328 = vld [vmem:[%s291 + $0x14] sm:$0xf]
      %v329 = vld [vmem:[%s291 + $0x18] sm:$0xf]
      %v330 = vld [vmem:[%s291 + $0x1c] sm:$0xf]
      %v331 = vld [vmem:[%s291 + $0x20] sm:$0xf]
      %v332 = vld [vmem:[%s291 + $0x24] sm:$0xf]
      %v333 = vld [vmem:[%s291 + $0x28] sm:$0xf]
      %v334 = vld [vmem:[%s291 + $0x2c] sm:$0xf]
      %v335 = vld [vmem:[%s291 + $0x30] sm:$0xf]
      %v336 = vld [vmem:[%s291 + $0x34] sm:$0xf]
      %v337 = vld [vmem:[%s291 + $0x38] sm:$0xf]
      %v338 = vld [vmem:[%s291 + $0x3c] sm:$0xf]
      %v341 = vunpack.c.l.b16 %v321
      %v342 = vunpack.c.l.b16 %v322
      %v343 = vpack.c.b16 %v342, %v341
      %v361 = vunpack.c.l.b16 %v323
      %v362 = vunpack.c.l.b16 %v324
      %v363 = vunpack.c.l.b16 %v325
      %v364 = vunpack.c.l.b16 %v326
      %v365 = vunpack.c.l.b16 %v327
      %v366 = vunpack.c.l.b16 %v328
      %v367 = vunpack.c.l.b16 %v329
      %v368 = vunpack.c.l.b16 %v330
      %v369 = vunpack.c.l.b16 %v331
      %v370 = vunpack.c.l.b16 %v332
      %v371 = vunpack.c.l.b16 %v333
      %v372 = vunpack.c.l.b16 %v334
      %v373 = vunpack.c.l.b16 %v335
      %v374 = vunpack.c.l.b16 %v336
      %v375 = vunpack.c.l.b16 %v337
      %v376 = vunpack.c.l.b16 %v338
      %v377 = vpack.c.b16 %v362, %v361
      %v378 = vpack.c.b16 %v364, %v363
      %v379 = vpack.c.b16 %v366, %v365
      %v380 = vpack.c.b16 %v368, %v367
      %v381 = vpack.c.b16 %v370, %v369
      %v382 = vpack.c.b16 %v372, %v371
      %v383 = vpack.c.b16 %v374, %v373
      %v384 = vpack.c.b16 %v376, %v375
      %393 = vmatprep.subr.bf16.mxu0 0
      %394 = vmatpush1.bf16.msra.mxu0 %v377
      %395 = vmatprep.subr.bf16.mxu0 0
      %396 = vmatpush1.bf16.msra.mxu0 %v378
      %397 = vmatprep.subr.bf16.mxu0 0
      %398 = vmatpush1.bf16.msra.mxu0 %v379
      %399 = vmatprep.subr.bf16.mxu0 0
      %400 = vmatpush1.bf16.msra.mxu0 %v380
      %401 = vmatprep.subr.bf16.mxu0 0
      %402 = vmatpush1.bf16.msra.mxu0 %v381
      %403 = vmatprep.subr.bf16.mxu0 0
      %404 = vmatpush1.bf16.msra.mxu0 %v382
      %405 = vmatprep.subr.bf16.mxu0 0
      %406 = vmatpush1.bf16.msra.mxu0 %v383
      %407 = vmatprep.subr.bf16.mxu0 0
      %408 = vmatpush1.bf16.msra.mxu0 %v384
      %409 = vmatprep.subr.bf16.mxu0 0
      %410 = vmatpush1.bf16.msra.mxu0 0
      %411 = vmatprep.subr.bf16.mxu0 0
      %412 = vmatpush1.bf16.msra.mxu0 0
      %413 = vmatprep.subr.bf16.mxu0 0
      %414 = vmatpush1.bf16.msra.mxu0 0
      %415 = vmatprep.subr.bf16.mxu0 0
      %416 = vmatpush1.bf16.msra.mxu0 0
      %417 = vmatprep.subr.bf16.mxu0 0
      %418 = vmatpush1.bf16.msra.mxu0 0
      %419 = vmatprep.subr.bf16.mxu0 0
      %420 = vmatpush1.bf16.msra.mxu0 0
      %421 = vmatprep.subr.bf16.mxu0 0
      %422 = vmatpush1.bf16.msra.mxu0 0
      %423 = vmatprep.subr.bf16.mxu0 0
      %424 = vmatpush1.bf16.msra.mxu0 0
      %425 = vmatprep.mubr.bf16.mxu0 0
      %426 = vmatmul.mubr.bf16.gmra.mrb[0].mxu0 %v343
      %v427 = vpop.f32.mrb[0].mxu0
      %v428 = vadd.f32 0.0, %v427
      %v429 = vpop.f32.mrb[0].mxu0
      %v430 = vpop.f32.mrb[0].mxu0
      %v431 = vadd.f32 0.0, %v430
      %v432 = vpop.f32.mrb[0].mxu0
      %433 = vdwg.mxu0
      %v434 = vadd.f32 %v319, %v428
      %v435 = vadd.f32 %v320, %v431
      %436 = vst [vmem:[#allocation2] sm:$0xff] %v434
      %437 = vst [vmem:[#allocation2 + $0x8] sm:$0xff] %v435
      // Predicated region
      $region37: #{fwd.4} parent=31 // pred_check
        %p438 = pneg %p313
      $region38: #{fwd.4} parent=31 // pred_check_branch
        %440 = sbr.rel (%p438) target = $region40
      $region39: #{fwd.4} parent=31 // pred_region
        %v441 = vld [vmem:[#allocation2] sm:$0xff]
        %v442 = vld [vmem:[#allocation2 + $0x8] sm:$0xff]
        %v443 = vld [vmem:[%s297] sm:$0xff]
        %v444 = vld [vmem:[%s297 + $0x8] sm:$0xff]
        %446 = vset.pattern.permute.xlu0 0
        %447 = vperm.xlu0 %446, %v443
        %v448 = vpop.permute.xlu0 %447
        %451 = vset.pattern.permute.xlu0 0
        %452 = vperm.xlu0 %451, %v444
        %v453 = vpop.permute.xlu0 %452
        %v455 = vadd.f32 %v441, %v448
        %v456 = vadd.f32 %v442, %v453
        %v457 = vmax.f32 %v455, 0.0
        %v458 = vmax.f32 %v456, 0.0
        %v459 = vpack.c.bf16 %v458, %v457
        %v461 = vunpack.c.l.b16 %v459
        %v462 = vunpack.c.h.b16 %v459
        %v463 = vpack.c.b16 %v461, %v461
        %v464 = vpack.c.b16 %v462, %v462
        %467 = vst [vmem:[%s310] sm:$0xf] %v463
        %468 = vst [vmem:[%s310 + $0x4] sm:$0xf] %v464
      $region40: #{fwd.4} parent=31 // pred_fallthru
        _
      %s469 = smul.u32 2, %s21
      %p470 = scmp.lt.s32.totalorder %s20, 3
      %s471 = scalar_select %p470, %s20, 3
      %p472 = scmp.lt.s32.totalorder %s469, 1
      %s473 = scalar_select %p472, %s469, 1
      %p474 = scmp.lt.s32.totalorder %s22, 0
      %s475 = scalar_select %p474, %s22, 0
      %s476 = sadd.s32 %s475, %s473
      %s477 = smul.addr %s471, 2
      %s478 = sadd.s32 %s476, %s477
      %s479 = smul.addr %s478, 4
      %s480 = scalar_lea.vmem %s3, %s479
      // Predicated region
      $region41: #{fwd.4} parent=31 // pred_check
        %p481 = pneg %p148
      $region42: #{fwd.4} parent=31 // pred_check_branch
        %483 = sbr.rel (%p481) target = $region44
      $region43: #{fwd.4} parent=31 // pred_region
        %s484 = smul.u32 2, %s21
      $region44: #{fwd.4} parent=31 // pred_fallthru
        _
    $region32: #{fwd.4} parent=5 // pred_fallthru
      _
    %p485 = scmp.le.s32.totalorder 2, %s9
    // Predicated region
    $region45: #{fwd.4} parent=5 // pred_check
      %p486 = pneg %p485
    $region46: #{fwd.4} parent=5 // pred_check_branch
      %488 = sbr.rel (%p486) target = $region48
    $region47: #{fwd.4} parent=5 // pred_region
      %s489 = ssub.s32 %s9, 2
      // Predicated region
      $region49: #{fwd.4} parent=47 // pred_check
        %p490 = pneg %p154
      $region50: #{fwd.4} parent=47 // pred_check_branch
        %492 = sbr.rel (%p490) target = $region52
      $region51: #{fwd.4} parent=47 // pred_region
        %s493 = smul.u32 2, %s25
        %p494 = scmp.lt.s32.totalorder %s24, 3
        %s495 = scalar_select %p494, %s24, 3
        %p496 = scmp.lt.s32.totalorder %s493, 1
        %s497 = scalar_select %p496, %s493, 1
        %p498 = scmp.lt.s32.totalorder %s26, 0
        %s499 = scalar_select %p498, %s26, 0
        %s500 = sadd.s32 %s499, %s497
        %s501 = smul.addr %s495, 2
        %s502 = sadd.s32 %s500, %s501
        %s503 = smul.addr %s502, 4
        %s504 = scalar_lea.vmem %s3, %s503
      $region52: #{fwd.4} parent=47 // pred_fallthru
        _
    $region48: #{fwd.4} parent=5 // pred_fallthru
      _
  $region6: #{fwd.4} parent=0 // loop_footer
    %s13 = sadd.s32 1, %s9
  $region7: #{fwd.4} parent=0 // loop_footer_branch
    %8 = sbr.rel target = $region3
  $region8: #{fwd.4} parent=0 // loop_exit
    _

// kernel: fwd.3
$region0: #{fwd.3}
  #allocation0 [shape = 'u32[]', space=smem, size = 0x4, offset = 0x4, fixed_abs, tag = 'smem constant byte address 0x4 - core index']
  #allocation1 [shape = 'u32[144,128]{1,0:T(1,128)}', space=vmem, size = 0x12000, scoped, tag = 'internal scratch']
  #allocation2 [shape = 'f32[256,128]{1,0:T(8,128)}', space=vmem, size = 0x20000, scoped, tag = 'scratch operand']
  %s0 = inlined_call_operand.vmem [shape: bf16[1,256,128], index: 0, kind: input, shape index: {}]
  %s1 = inlined_call_operand.vmem [shape: bf16[1,128,128], index: 1, kind: input, shape index: {}]
  %s2 = inlined_call_operand.vmem [shape: f32[256,1], index: 2, kind: input, shape index: {}]
  %s3 = inlined_call_operand.vmem [shape: bf16[1,256,128], index: 3, kind: output, shape index: {}]
  %s4 = sld [smem:[#allocation0]]
  $region30: #{fwd.3} parent=0
    _
  %s6 = ssub.s32 1, %s4
  %s7 = scalar_select 0, %s6, %s4
  // Predicated region
  $region2: #{fwd.3} parent=0 // pred_check
    _
  $region3: #{fwd.3} parent=0 // pred_check_branch
    %9 = sbr.rel (0) target = $region5
  $region4: #{fwd.3} parent=0 // pred_region
    _
  $region5: #{fwd.3} parent=0 // pred_fallthru
    _
  // Predicated region
  $region6: #{fwd.3} parent=0 // pred_check
    _
  $region7: #{fwd.3} parent=0 // pred_check_branch
    %11 = sbr.rel (0) target = $region9
  $region8: #{fwd.3} parent=0 // pred_region
    _
  $region9: #{fwd.3} parent=0 // pred_fallthru
    _
  // Predicated region
  $region10: #{fwd.3} parent=0 // pred_check
    _
  $region11: #{fwd.3} parent=0 // pred_check_branch
    %13 = sbr.rel (0) target = $region13
  $region12: #{fwd.3} parent=0 // pred_region
    _
  $region13: #{fwd.3} parent=0 // pred_fallthru
    _
  %p15 = scmp.eq.s32.totalorder 0, 0
  // Predicated region
  $region14: #{fwd.3} parent=0 // pred_check
    %p16 = pneg %p15
  $region15: #{fwd.3} parent=0 // pred_check_branch
    %18 = sbr.rel (%p16) target = $region17
  $region16: #{fwd.3} parent=0 // pred_region
    %19 = vst [vmem:[#allocation2] sm:$0xff] 0.0
    %20 = vst [vmem:[#allocation2 + $0x8] sm:$0xff] 0.0
    %21 = vst [vmem:[#allocation2 + $0x10] sm:$0xff] 0.0
    %22 = vst [vmem:[#allocation2 + $0x18] sm:$0xff] 0.0
    %23 = vst [vmem:[#allocation2 + $0x20] sm:$0xff] 0.0
    %24 = vst [vmem:[#allocation2 + $0x28] sm:$0xff] 0.0
    %25 = vst [vmem:[#allocation2 + $0x30] sm:$0xff] 0.0
    %26 = vst [vmem:[#allocation2 + $0x38] sm:$0xff] 0.0
    %27 = vst [vmem:[#allocation2 + $0x40] sm:$0xff] 0.0
    %28 = vst [vmem:[#allocation2 + $0x48] sm:$0xff] 0.0
    %29 = vst [vmem:[#allocation2 + $0x50] sm:$0xff] 0.0
    %30 = vst [vmem:[#allocation2 + $0x58] sm:$0xff] 0.0
    %31 = vst [vmem:[#allocation2 + $0x60] sm:$0xff] 0.0
    %32 = vst [vmem:[#allocation2 + $0x68] sm:$0xff] 0.0
    %33 = vst [vmem:[#allocation2 + $0x70] sm:$0xff] 0.0
    %34 = vst [vmem:[#allocation2 + $0x78] sm:$0xff] 0.0
    %35 = vst [vmem:[#allocation2 + $0x80] sm:$0xff] 0.0
    %36 = vst [vmem:[#allocation2 + $0x88] sm:$0xff] 0.0
    %37 = vst [vmem:[#allocation2 + $0x90] sm:$0xff] 0.0
    %38 = vst [vmem:[#allocation2 + $0x98] sm:$0xff] 0.0
    %39 = vst [vmem:[#allocation2 + $0xa0] sm:$0xff] 0.0
    %40 = vst [vmem:[#allocation2 + $0xa8] sm:$0xff] 0.0
    %41 = vst [vmem:[#allocation2 + $0xb0] sm:$0xff] 0.0
    %42 = vst [vmem:[#allocation2 + $0xb8] sm:$0xff] 0.0
    %43 = vst [vmem:[#allocation2 + $0xc0] sm:$0xff] 0.0
    %44 = vst [vmem:[#allocation2 + $0xc8] sm:$0xff] 0.0
    %45 = vst [vmem:[#allocation2 + $0xd0] sm:$0xff] 0.0
    %46 = vst [vmem:[#allocation2 + $0xd8] sm:$0xff] 0.0
    %47 = vst [vmem:[#allocation2 + $0xe0] sm:$0xff] 0.0
    %48 = vst [vmem:[#allocation2 + $0xe8] sm:$0xff] 0.0
    %49 = vst [vmem:[#allocation2 + $0xf0] sm:$0xff] 0.0
    %50 = vst [vmem:[#allocation2 + $0xf8] sm:$0xff] 0.0
  $region17: #{fwd.3} parent=0 // pred_fallthru
    _
  %v51 = vld [vmem:[#allocation2] sm:$0xff]
  %v52 = vld [vmem:[#allocation2 + $0x8] sm:$0xff]
  %v53 = vld [vmem:[#allocation2 + $0x10] sm:$0xff]
  %v54 = vld [vmem:[#allocation2 + $0x18] sm:$0xff]
  %v55 = vld [vmem:[#allocation2 + $0x20] sm:$0xff]
  %v56 = vld [vmem:[#allocation2 + $0x28] sm:$0xff]
  %v57 = vld [vmem:[#allocation2 + $0x30] sm:$0xff]
  %v58 = vld [vmem:[#allocation2 + $0x38] sm:$0xff]
  %v59 = vld [vmem:[#allocation2 + $0x40] sm:$0xff]
  %v60 = vld [vmem:[#allocation2 + $0x48] sm:$0xff]
  %v61 = vld [vmem:[#allocation2 + $0x50] sm:$0xff]
  %v62 = vld [vmem:[#allocation2 + $0x58] sm:$0xff]
  %v63 = vld [vmem:[#allocation2 + $0x60] sm:$0xff]
  %v64 = vld [vmem:[#allocation2 + $0x68] sm:$0xff]
  %v65 = vld [vmem:[#allocation2 + $0x70] sm:$0xff]
  %v66 = vld [vmem:[#allocation2 + $0x78] sm:$0xff]
  %v67 = vld [vmem:[#allocation2 + $0x80] sm:$0xff]
  %v68 = vld [vmem:[#allocation2 + $0x88] sm:$0xff]
  %v69 = vld [vmem:[#allocation2 + $0x90] sm:$0xff]
  %v70 = vld [vmem:[#allocation2 + $0x98] sm:$0xff]
  %v71 = vld [vmem:[#allocation2 + $0xa0] sm:$0xff]
  %v72 = vld [vmem:[#allocation2 + $0xa8] sm:$0xff]
  %v73 = vld [vmem:[#allocation2 + $0xb0] sm:$0xff]
  %v74 = vld [vmem:[#allocation2 + $0xb8] sm:$0xff]
  %v75 = vld [vmem:[#allocation2 + $0xc0] sm:$0xff]
  %v76 = vld [vmem:[#allocation2 + $0xc8] sm:$0xff]
  %v77 = vld [vmem:[#allocation2 + $0xd0] sm:$0xff]
  %v78 = vld [vmem:[#allocation2 + $0xd8] sm:$0xff]
  %v79 = vld [vmem:[#allocation2 + $0xe0] sm:$0xff]
  %v80 = vld [vmem:[#allocation2 + $0xe8] sm:$0xff]
  %v81 = vld [vmem:[#allocation2 + $0xf0] sm:$0xff]
  %v82 = vld [vmem:[#allocation2 + $0xf8] sm:$0xff]
  %v83 = vld [vmem:[%s0] sm:$0xf]
  %v84 = vld [vmem:[%s0 + $0x4] sm:$0xf]
  %v85 = vld [vmem:[%s0 + $0x8] sm:$0xf]
  %v86 = vld [vmem:[%s0 + $0xc] sm:$0xf]
  %v87 = vld [vmem:[%s0 + $0x10] sm:$0xf]
  %v88 = vld [vmem:[%s0 + $0x14] sm:$0xf]
  %v89 = vld [vmem:[%s0 + $0x18] sm:$0xf]
  %v90 = vld [vmem:[%s0 + $0x1c] sm:$0xf]
  %v91 = vld [vmem:[%s0 + $0x20] sm:$0xf]
  %v92 = vld [vmem:[%s0 + $0x24] sm:$0xf]
  %v93 = vld [vmem:[%s0 + $0x28] sm:$0xf]
  %v94 = vld [vmem:[%s0 + $0x2c] sm:$0xf]
  %v95 = vld [vmem:[%s0 + $0x30] sm:$0xf]
  %v96 = vld [vmem:[%s0 + $0x34] sm:$0xf]
  %v97 = vld [vmem:[%s0 + $0x38] sm:$0xf]
  %v98 = vld [vmem:[%s0 + $0x3c] sm:$0xf]
  %v99 = vld [vmem:[%s0 + $0x40] sm:$0xf]
  %v100 = vld [vmem:[%s0 + $0x44] sm:$0xf]
  %v101 = vld [vmem:[%s0 + $0x48] sm:$0xf]
  %v102 = vld [vmem:[%s0 + $0x4c] sm:$0xf]
  %v103 = vld [vmem:[%s0 + $0x50] sm:$0xf]
  %v104 = vld [vmem:[%s0 + $0x54] sm:$0xf]
  %v105 = vld [vmem:[%s0 + $0x58] sm:$0xf]
  %v106 = vld [vmem:[%s0 + $0x5c] sm:$0xf]
  %v107 = vld [vmem:[%s0 + $0x60] sm:$0xf]
  %v108 = vld [vmem:[%s0 + $0x64] sm:$0xf]
  %v109 = vld [vmem:[%s0 + $0x68] sm:$0xf]
  %v110 = vld [vmem:[%s0 + $0x6c] sm:$0xf]
  %v111 = vld [vmem:[%s0 + $0x70] sm:$0xf]
  %v112 = vld [vmem:[%s0 + $0x74] sm:$0xf]
  %v113 = vld [vmem:[%s0 + $0x78] sm:$0xf]
  %v114 = vld [vmem:[%s0 + $0x7c] sm:$0xf]
  %v115 = vld [vmem:[%s1] sm:$0xf]
  %v116 = vld [vmem:[%s1 + $0x4] sm:$0xf]
  %v117 = vld [vmem:[%s1 + $0x8] sm:$0xf]
  %v118 = vld [vmem:[%s1 + $0xc] sm:$0xf]
  %v119 = vld [vmem:[%s1 + $0x10] sm:$0xf]
  %v120 = vld [vmem:[%s1 + $0x14] sm:$0xf]
  %v121 = vld [vmem:[%s1 + $0x18] sm:$0xf]
  %v122 = vld [vmem:[%s1 + $0x1c] sm:$0xf]
  %v123 = vld [vmem:[%s1 + $0x20] sm:$0xf]
  %v124 = vld [vmem:[%s1 + $0x24] sm:$0xf]
  %v125 = vld [vmem:[%s1 + $0x28] sm:$0xf]
  %v126 = vld [vmem:[%s1 + $0x2c] sm:$0xf]
  %v127 = vld [vmem:[%s1 + $0x30] sm:$0xf]
  %v128 = vld [vmem:[%s1 + $0x34] sm:$0xf]
  %v129 = vld [vmem:[%s1 + $0x38] sm:$0xf]
  %v130 = vld [vmem:[%s1 + $0x3c] sm:$0xf]
  %v163 = vunpack.c.l.b16 %v83
  %v164 = vunpack.c.l.b16 %v84
  %v165 = vunpack.c.l.b16 %v85
  %v166 = vunpack.c.l.b16 %v86
  %v167 = vunpack.c.l.b16 %v87
  %v168 = vunpack.c.l.b16 %v88
  %v169 = vunpack.c.l.b16 %v89
  %v170 = vunpack.c.l.b16 %v90
  %v171 = vunpack.c.l.b16 %v91
  %v172 = vunpack.c.l.b16 %v92
  %v173 = vunpack.c.l.b16 %v93
  %v174 = vunpack.c.l.b16 %v94
  %v175 = vunpack.c.l.b16 %v95
  %v176 = vunpack.c.l.b16 %v96
  %v177 = vunpack.c.l.b16 %v97
  %v178 = vunpack.c.l.b16 %v98
  %v179 = vunpack.c.l.b16 %v99
  %v180 = vunpack.c.l.b16 %v100
  %v181 = vunpack.c.l.b16 %v101
  %v182 = vunpack.c.l.b16 %v102
  %v183 = vunpack.c.l.b16 %v103
  %v184 = vunpack.c.l.b16 %v104
  %v185 = vunpack.c.l.b16 %v105
  %v186 = vunpack.c.l.b16 %v106
  %v187 = vunpack.c.l.b16 %v107
  %v188 = vunpack.c.l.b16 %v108
  %v189 = vunpack.c.l.b16 %v109
  %v190 = vunpack.c.l.b16 %v110
  %v191 = vunpack.c.l.b16 %v111
  %v192 = vunpack.c.l.b16 %v112
  %v193 = vunpack.c.l.b16 %v113
  %v194 = vunpack.c.l.b16 %v114
  %v195 = vpack.c.b16 %v164, %v163
  %v196 = vpack.c.b16 %v166, %v165
  %v197 = vpack.c.b16 %v168, %v167
  %v198 = vpack.c.b16 %v170, %v169
  %v199 = vpack.c.b16 %v172, %v171
  %v200 = vpack.c.b16 %v174, %v173
  %v201 = vpack.c.b16 %v176, %v175
  %v202 = vpack.c.b16 %v178, %v177
  %v203 = vpack.c.b16 %v180, %v179
  %v204 = vpack.c.b16 %v182, %v181
  %v205 = vpack.c.b16 %v184, %v183
  %v206 = vpack.c.b16 %v186, %v185
  %v207 = vpack.c.b16 %v188, %v187
  %v208 = vpack.c.b16 %v190, %v189
  %v209 = vpack.c.b16 %v192, %v191
  %v210 = vpack.c.b16 %v194, %v193
  %v243 = vunpack.c.l.b16 %v115
  %v244 = vunpack.c.l.b16 %v116
  %v245 = vunpack.c.l.b16 %v117
  %v246 = vunpack.c.l.b16 %v118
  %v247 = vunpack.c.l.b16 %v119
  %v248 = vunpack.c.l.b16 %v120
  %v249 = vunpack.c.l.b16 %v121
  %v250 = vunpack.c.l.b16 %v122
  %v251 = vunpack.c.l.b16 %v123
  %v252 = vunpack.c.l.b16 %v124
  %v253 = vunpack.c.l.b16 %v125
  %v254 = vunpack.c.l.b16 %v126
  %v255 = vunpack.c.l.b16 %v127
  %v256 = vunpack.c.l.b16 %v128
  %v257 = vunpack.c.l.b16 %v129
  %v258 = vunpack.c.l.b16 %v130
  %v259 = vpack.c.b16 %v244, %v243
  %v260 = vpack.c.b16 %v246, %v245
  %v261 = vpack.c.b16 %v248, %v247
  %v262 = vpack.c.b16 %v250, %v249
  %v263 = vpack.c.b16 %v252, %v251
  %v264 = vpack.c.b16 %v254, %v253
  %v265 = vpack.c.b16 %v256, %v255
  %v266 = vpack.c.b16 %v258, %v257
  %275 = vmatprep.subr.bf16.mxu0 0
  %276 = vmatpush1.bf16.msra.mxu0 %v259
  %277 = vmatprep.subr.bf16.mxu0 0
  %278 = vmatpush1.bf16.msra.mxu0 %v260
  %279 = vmatprep.subr.bf16.mxu0 0
  %280 = vmatpush1.bf16.msra.mxu0 %v261
  %281 = vmatprep.subr.bf16.mxu0 0
  %282 = vmatpush1.bf16.msra.mxu0 %v262
  %283 = vmatprep.subr.bf16.mxu0 0
  %284 = vmatpush1.bf16.msra.mxu0 %v263
  %285 = vmatprep.subr.bf16.mxu0 0
  %286 = vmatpush1.bf16.msra.mxu0 %v264
  %287 = vmatprep.subr.bf16.mxu0 0
  %288 = vmatpush1.bf16.msra.mxu0 %v265
  %289 = vmatprep.subr.bf16.mxu0 0
  %290 = vmatpush1.bf16.msra.mxu0 %v266
  %291 = vmatprep.subr.bf16.mxu0 0
  %292 = vmatpush1.bf16.msra.mxu0 0
  %293 = vmatprep.subr.bf16.mxu0 0
  %294 = vmatpush1.bf16.msra.mxu0 0
  %295 = vmatprep.subr.bf16.mxu0 0
  %296 = vmatpush1.bf16.msra.mxu0 0
  %297 = vmatprep.subr.bf16.mxu0 0
  %298 = vmatpush1.bf16.msra.mxu0 0
  %299 = vmatprep.subr.bf16.mxu0 0
  %300 = vmatpush1.bf16.msra.mxu0 0
  %301 = vmatprep.subr.bf16.mxu0 0
  %302 = vmatpush1.bf16.msra.mxu0 0
  %303 = vmatprep.subr.bf16.mxu0 0
  %304 = vmatpush1.bf16.msra.mxu0 0
  %305 = vmatprep.subr.bf16.mxu0 0
  %306 = vmatpush1.bf16.msra.mxu0 0
  %307 = vmatprep.mubr.bf16.mxu0 0
  %308 = vmatmul.mubr.bf16.gmra.mrb[0].mxu0 %v195
  %v309 = vpop.f32.mrb[0].mxu0
  %v310 = vadd.f32 0.0, %v309
  %v311 = vpop.f32.mrb[0].mxu0
  %v312 = vpop.f32.mrb[0].mxu0
  %v313 = vadd.f32 0.0, %v312
  %v314 = vpop.f32.mrb[0].mxu0
  %315 = vmatprep.mubr.bf16.mxu0 0
  %316 = vmatmul.mubr.bf16.gmra.mrb[0].mxu0 %v196
  %v317 = vpop.f32.mrb[0].mxu0
  %v318 = vadd.f32 0.0, %v317
  %v319 = vpop.f32.mrb[0].mxu0
  %v320 = vpop.f32.mrb[0].mxu0
  %v321 = vadd.f32 0.0, %v320
  %v322 = vpop.f32.mrb[0].mxu0
  %323 = vmatprep.mubr.bf16.mxu0 0
  %324 = vmatmul.mubr.bf16.gmra.mrb[0].mxu0 %v197
  %v325 = vpop.f32.mrb[0].mxu0
  %v326 = vadd.f32 0.0, %v325
  %v327 = vpop.f32.mrb[0].mxu0
  %v328 = vpop.f32.mrb[0].mxu0
  %v329 = vadd.f32 0.0, %v328
  %v330 = vpop.f32.mrb[0].mxu0
  %331 = vmatprep.mubr.bf16.mxu0 0
  %332 = vmatmul.mubr.bf16.gmra.mrb[0].mxu0 %v198
  %v333 = vpop.f32.mrb[0].mxu0
  %v334 = vadd.f32 0.0, %v333
  %v335 = vpop.f32.mrb[0].mxu0
  %v336 = vpop.f32.mrb[0].mxu0
  %v337 = vadd.f32 0.0, %v336
  %v338 = vpop.f32.mrb[0].mxu0
  %339 = vmatprep.mubr.bf16.mxu0 0
  %340 = vmatmul.mubr.bf16.gmra.mrb[0].mxu0 %v199
  %v341 = vpop.f32.mrb[0].mxu0
  %v342 = vadd.f32 0.0, %v341
  %v343 = vpop.f32.mrb[0].mxu0
  %v344 = vpop.f32.mrb[0].mxu0
  %v345 = vadd.f32 0.0, %v344
  %v346 = vpop.f32.mrb[0].mxu0
  %347 = vmatprep.mubr.bf16.mxu0 0
  %348 = vmatmul.mubr.bf16.gmra.mrb[0].mxu0 %v200
  %v349 = vpop.f32.mrb[0].mxu0
  %v350 = vadd.f32 0.0, %v349
  %v351 = vpop.f32.mrb[0].mxu0
  %v352 = vpop.f32.mrb[0].mxu0
  %v353 = vadd.f32 0.0, %v352
  %v354 = vpop.f32.mrb[0].mxu0
  %355 = vmatprep.mubr.bf16.mxu0 0
  %356 = vmatmul.mubr.bf16.gmra.mrb[0].mxu0 %v201
  %v357 = vpop.f32.mrb[0].mxu0
  %v358 = vadd.f32 0.0, %v357
  %v359 = vpop.f32.mrb[0].mxu0
  %v360 = vpop.f32.mrb[0].mxu0
  %v361 = vadd.f32 0.0, %v360
  %v362 = vpop.f32.mrb[0].mxu0
  %363 = vmatprep.mubr.bf16.mxu0 0
  %364 = vmatmul.mubr.bf16.gmra.mrb[0].mxu0 %v202
  %v365 = vpop.f32.mrb[0].mxu0
  %v366 = vadd.f32 0.0, %v365
  %v367 = vpop.f32.mrb[0].mxu0
  %v368 = vpop.f32.mrb[0].mxu0
  %v369 = vadd.f32 0.0, %v368
  %v370 = vpop.f32.mrb[0].mxu0
  %371 = vmatprep.mubr.bf16.mxu0 0
  %372 = vmatmul.mubr.bf16.gmra.mrb[0].mxu0 %v203
  %v373 = vpop.f32.mrb[0].mxu0
  %v374 = vadd.f32 0.0, %v373
  %v375 = vpop.f32.mrb[0].mxu0
  %v376 = vpop.f32.mrb[0].mxu0
  %v377 = vadd.f32 0.0, %v376
  %v378 = vpop.f32.mrb[0].mxu0
  %379 = vmatprep.mubr.bf16.mxu0 0
  %380 = vmatmul.mubr.bf16.gmra.mrb[0].mxu0 %v204
  %v381 = vpop.f32.mrb[0].mxu0
  %v382 = vadd.f32 0.0, %v381
  %v383 = vpop.f32.mrb[0].mxu0
  %v384 = vpop.f32.mrb[0].mxu0
  %v385 = vadd.f32 0.0, %v384
  %v386 = vpop.f32.mrb[0].mxu0
  %387 = vmatprep.mubr.bf16.mxu0 0
  %388 = vmatmul.mubr.bf16.gmra.mrb[0].mxu0 %v205
  %v389 = vpop.f32.mrb[0].mxu0
  %v390 = vadd.f32 0.0, %v389
  %v391 = vpop.f32.mrb[0].mxu0
  %v392 = vpop.f32.mrb[0].mxu0
  %v393 = vadd.f32 0.0, %v392
  %v394 = vpop.f32.mrb[0].mxu0
  %395 = vmatprep.mubr.bf16.mxu0 0
  %396 = vmatmul.mubr.bf16.gmra.mrb[0].mxu0 %v206
  %v397 = vpop.f32.mrb[0].mxu0
  %v398 = vadd.f32 0.0, %v397
  %v399 = vpop.f32.mrb[0].mxu0
  %v400 = vpop.f32.mrb[0].mxu0
  %v401 = vadd.f32 0.0, %v400
  %v402 = vpop.f32.mrb[0].mxu0
  %403 = vmatprep.mubr.bf16.mxu0 0
  %404 = vmatmul.mubr.bf16.gmra.mrb[0].mxu0 %v207
  %v405 = vpop.f32.mrb[0].mxu0
  %v406 = vadd.f32 0.0, %v405
  %v407 = vpop.f32.mrb[0].mxu0
  %v408 = vpop.f32.mrb[0].mxu0
  %v409 = vadd.f32 0.0, %v408
  %v410 = vpop.f32.mrb[0].mxu0
  %411 = vmatprep.mubr.bf16.mxu0 0
  %412 = vmatmul.mubr.bf16.gmra.mrb[0].mxu0 %v208
  %v413 = vpop.f32.mrb[0].mxu0
  %v414 = vadd.f32 0.0, %v413
  %v415 = vpop.f32.mrb[0].mxu0
  %v416 = vpop.f32.mrb[0].mxu0
  %v417 = vadd.f32 0.0, %v416
  %v418 = vpop.f32.mrb[0].mxu0
  %419 = vmatprep.mubr.bf16.mxu0 0
  %420 = vmatmul.mubr.bf16.gmra.mrb[0].mxu0 %v209
  %v421 = vpop.f32.mrb[0].mxu0
  %v422 = vadd.f32 0.0, %v421
  %v423 = vpop.f32.mrb[0].mxu0
  %v424 = vpop.f32.mrb[0].mxu0
  %v425 = vadd.f32 0.0, %v424
  %v426 = vpop.f32.mrb[0].mxu0
  %427 = vmatprep.mubr.bf16.mxu0 0
  %428 = vmatmul.mubr.bf16.gmra.mrb[0].mxu0 %v210
  %v429 = vpop.f32.mrb[0].mxu0
  %v430 = vadd.f32 0.0, %v429
  %v431 = vpop.f32.mrb[0].mxu0
  %v432 = vpop.f32.mrb[0].mxu0
  %v433 = vadd.f32 0.0, %v432
  %v434 = vpop.f32.mrb[0].mxu0
  %435 = vdwg.mxu0
  %v436 = vadd.f32 %v51, %v310
  %v437 = vadd.f32 %v52, %v313
  %v438 = vadd.f32 %v53, %v318
  %v439 = vadd.f32 %v54, %v321
  %v440 = vadd.f32 %v55, %v326
  %v441 = vadd.f32 %v56, %v329
  %v442 = vadd.f32 %v57, %v334
  %v443 = vadd.f32 %v58, %v337
  %v444 = vadd.f32 %v59, %v342
  %v445 = vadd.f32 %v60, %v345
  %v446 = vadd.f32 %v61, %v350
  %v447 = vadd.f32 %v62, %v353
  %v448 = vadd.f32 %v63, %v358
  %v449 = vadd.f32 %v64, %v361
  %v450 = vadd.f32 %v65, %v366
  %v451 = vadd.f32 %v66, %v369
  %v452 = vadd.f32 %v67, %v374
  %v453 = vadd.f32 %v68, %v377
  %v454 = vadd.f32 %v69, %v382
  %v455 = vadd.f32 %v70, %v385
  %v456 = vadd.f32 %v71, %v390
  %v457 = vadd.f32 %v72, %v393
  %v458 = vadd.f32 %v73, %v398
  %v459 = vadd.f32 %v74, %v401
  %v460 = vadd.f32 %v75, %v406
  %v461 = vadd.f32 %v76, %v409
  %v462 = vadd.f32 %v77, %v414
  %v463 = vadd.f32 %v78, %v417
  %v464 = vadd.f32 %v79, %v422
  %v465 = vadd.f32 %v80, %v425
  %v466 = vadd.f32 %v81, %v430
  %v467 = vadd.f32 %v82, %v433
  %468 = vst [vmem:[#allocation2] sm:$0xff] %v436
  %469 = vst [vmem:[#allocation2 + $0x8] sm:$0xff] %v437
  %470 = vst [vmem:[#allocation2 + $0x10] sm:$0xff] %v438
  %471 = vst [vmem:[#allocation2 + $0x18] sm:$0xff] %v439
  %472 = vst [vmem:[#allocation2 + $0x20] sm:$0xff] %v440
  %473 = vst [vmem:[#allocation2 + $0x28] sm:$0xff] %v441
  %474 = vst [vmem:[#allocation2 + $0x30] sm:$0xff] %v442
  %475 = vst [vmem:[#allocation2 + $0x38] sm:$0xff] %v443
  %476 = vst [vmem:[#allocation2 + $0x40] sm:$0xff] %v444
  %477 = vst [vmem:[#allocation2 + $0x48] sm:$0xff] %v445
  %478 = vst [vmem:[#allocation2 + $0x50] sm:$0xff] %v446
  %479 = vst [vmem:[#allocation2 + $0x58] sm:$0xff] %v447
  %480 = vst [vmem:[#allocation2 + $0x60] sm:$0xff] %v448
  %481 = vst [vmem:[#allocation2 + $0x68] sm:$0xff] %v449
  %482 = vst [vmem:[#allocation2 + $0x70] sm:$0xff] %v450
  %483 = vst [vmem:[#allocation2 + $0x78] sm:$0xff] %v451
  %484 = vst [vmem:[#allocation2 + $0x80] sm:$0xff] %v452
  %485 = vst [vmem:[#allocation2 + $0x88] sm:$0xff] %v453
  %486 = vst [vmem:[#allocation2 + $0x90] sm:$0xff] %v454
  %487 = vst [vmem:[#allocation2 + $0x98] sm:$0xff] %v455
  %488 = vst [vmem:[#allocation2 + $0xa0] sm:$0xff] %v456
  %489 = vst [vmem:[#allocation2 + $0xa8] sm:$0xff] %v457
  %490 = vst [vmem:[#allocation2 + $0xb0] sm:$0xff] %v458
  %491 = vst [vmem:[#allocation2 + $0xb8] sm:$0xff] %v459
  %492 = vst [vmem:[#allocation2 + $0xc0] sm:$0xff] %v460
  %493 = vst [vmem:[#allocation2 + $0xc8] sm:$0xff] %v461
  %494 = vst [vmem:[#allocation2 + $0xd0] sm:$0xff] %v462
  %495 = vst [vmem:[#allocation2 + $0xd8] sm:$0xff] %v463
  %496 = vst [vmem:[#allocation2 + $0xe0] sm:$0xff] %v464
  %497 = vst [vmem:[#allocation2 + $0xe8] sm:$0xff] %v465
  %498 = vst [vmem:[#allocation2 + $0xf0] sm:$0xff] %v466
  %499 = vst [vmem:[#allocation2 + $0xf8] sm:$0xff] %v467
  // Predicated region
  $region18: #{fwd.3} parent=0 // pred_check
    %p500 = pneg %p15
  $region19: #{fwd.3} parent=0 // pred_check_branch
    %502 = sbr.rel (%p500) target = $region21
  $region20: #{fwd.3} parent=0 // pred_region
    %v503 = vld [vmem:[#allocation2] sm:$0xff]
    %v504 = vld [vmem:[#allocation2 + $0x8] sm:$0xff]
    %v505 = vld [vmem:[#allocation2 + $0x10] sm:$0xff]
    %v506 = vld [vmem:[#allocation2 + $0x18] sm:$0xff]
    %v507 = vld [vmem:[#allocation2 + $0x20] sm:$0xff]
    %v508 = vld [vmem:[#allocation2 + $0x28] sm:$0xff]
    %v509 = vld [vmem:[#allocation2 + $0x30] sm:$0xff]
    %v510 = vld [vmem:[#allocation2 + $0x38] sm:$0xff]
    %v511 = vld [vmem:[#allocation2 + $0x40] sm:$0xff]
    %v512 = vld [vmem:[#allocation2 + $0x48] sm:$0xff]
    %v513 = vld [vmem:[#allocation2 + $0x50] sm:$0xff]
    %v514 = vld [vmem:[#allocation2 + $0x58] sm:$0xff]
    %v515 = vld [vmem:[#allocation2 + $0x60] sm:$0xff]
    %v516 = vld [vmem:[#allocation2 + $0x68] sm:$0xff]
    %v517 = vld [vmem:[#allocation2 + $0x70] sm:$0xff]
    %v518 = vld [vmem:[#allocation2 + $0x78] sm:$0xff]
    %v519 = vld [vmem:[#allocation2 + $0x80] sm:$0xff]
    %v520 = vld [vmem:[#allocation2 + $0x88] sm:$0xff]
    %v521 = vld [vmem:[#allocation2 + $0x90] sm:$0xff]
    %v522 = vld [vmem:[#allocation2 + $0x98] sm:$0xff]
    %v523 = vld [vmem:[#allocation2 + $0xa0] sm:$0xff]
    %v524 = vld [vmem:[#allocation2 + $0xa8] sm:$0xff]
    %v525 = vld [vmem:[#allocation2 + $0xb0] sm:$0xff]
    %v526 = vld [vmem:[#allocation2 + $0xb8] sm:$0xff]
    %v527 = vld [vmem:[#allocation2 + $0xc0] sm:$0xff]
    %v528 = vld [vmem:[#allocation2 + $0xc8] sm:$0xff]
    %v529 = vld [vmem:[#allocation2 + $0xd0] sm:$0xff]
    %v530 = vld [vmem:[#allocation2 + $0xd8] sm:$0xff]
    %v531 = vld [vmem:[#allocation2 + $0xe0] sm:$0xff]
    %v532 = vld [vmem:[#allocation2 + $0xe8] sm:$0xff]
    %v533 = vld [vmem:[#allocation2 + $0xf0] sm:$0xff]
    %v534 = vld [vmem:[#allocation2 + $0xf8] sm:$0xff]
    %v535 = vld [vmem:[%s2] sm:$0xff]
    %v536 = vld [vmem:[%s2 + $0x8] sm:$0xff]
    %v537 = vld [vmem:[%s2 + $0x10] sm:$0xff]
    %v538 = vld [vmem:[%s2 + $0x18] sm:$0xff]
    %v539 = vld [vmem:[%s2 + $0x20] sm:$0xff]
    %v540 = vld [vmem:[%s2 + $0x28] sm:$0xff]
    %v541 = vld [vmem:[%s2 + $0x30] sm:$0xff]
    %v542 = vld [vmem:[%s2 + $0x38] sm:$0xff]
    %v543 = vld [vmem:[%s2 + $0x40] sm:$0xff]
    %v544 = vld [vmem:[%s2 + $0x48] sm:$0xff]
    %v545 = vld [vmem:[%s2 + $0x50] sm:$0xff]
    %v546 = vld [vmem:[%s2 + $0x58] sm:$0xff]
    %v547 = vld [vmem:[%s2 + $0x60] sm:$0xff]
    %v548 = vld [vmem:[%s2 + $0x68] sm:$0xff]
    %v549 = vld [vmem:[%s2 + $0x70] sm:$0xff]
    %v550 = vld [vmem:[%s2 + $0x78] sm:$0xff]
    %v551 = vld [vmem:[%s2 + $0x80] sm:$0xff]
    %v552 = vld [vmem:[%s2 + $0x88] sm:$0xff]
    %v553 = vld [vmem:[%s2 + $0x90] sm:$0xff]
    %v554 = vld [vmem:[%s2 + $0x98] sm:$0xff]
    %v555 = vld [vmem:[%s2 + $0xa0] sm:$0xff]
    %v556 = vld [vmem:[%s2 + $0xa8] sm:$0xff]
    %v557 = vld [vmem:[%s2 + $0xb0] sm:$0xff]
    %v558 = vld [vmem:[%s2 + $0xb8] sm:$0xff]
    %v559 = vld [vmem:[%s2 + $0xc0] sm:$0xff]
    %v560 = vld [vmem:[%s2 + $0xc8] sm:$0xff]
    %v561 = vld [vmem:[%s2 + $0xd0] sm:$0xff]
    %v562 = vld [vmem:[%s2 + $0xd8] sm:$0xff]
    %v563 = vld [vmem:[%s2 + $0xe0] sm:$0xff]
    %v564 = vld [vmem:[%s2 + $0xe8] sm:$0xff]
    %v565 = vld [vmem:[%s2 + $0xf0] sm:$0xff]
    %v566 = vld [vmem:[%s2 + $0xf8] sm:$0xff]
    %568 = vset.pattern.permute.xlu0 0
    %569 = vperm.xlu0 %568, %v535
    %v570 = vpop.permute.xlu0 %569
    %573 = vset.pattern.permute.xlu0 0
    %574 = vperm.xlu0 %573, %v536
    %v575 = vpop.permute.xlu0 %574
    %578 = vset.pattern.permute.xlu0 0
    %579 = vperm.xlu0 %578, %v537
    %v580 = vpop.permute.xlu0 %579
    %583 = vset.pattern.permute.xlu0 0
    %584 = vperm.xlu0 %583, %v538
    %v585 = vpop.permute.xlu0 %584
    %588 = vset.pattern.permute.xlu0 0
    %589 = vperm.xlu0 %588, %v539
    %v590 = vpop.permute.xlu0 %589
    %593 = vset.pattern.permute.xlu0 0
    %594 = vperm.xlu0 %593, %v540
    %v595 = vpop.permute.xlu0 %594
    %598 = vset.pattern.permute.xlu0 0
    %599 = vperm.xlu0 %598, %v541
    %v600 = vpop.permute.xlu0 %599
    %603 = vset.pattern.permute.xlu0 0
    %604 = vperm.xlu0 %603, %v542
    %v605 = vpop.permute.xlu0 %604
    %608 = vset.pattern.permute.xlu0 0
    %609 = vperm.xlu0 %608, %v543
    %v610 = vpop.permute.xlu0 %609
    %613 = vset.pattern.permute.xlu0 0
    %614 = vperm.xlu0 %613, %v544
    %v615 = vpop.permute.xlu0 %614
    %618 = vset.pattern.permute.xlu0 0
    %619 = vperm.xlu0 %618, %v545
    %v620 = vpop.permute.xlu0 %619
    %623 = vset.pattern.permute.xlu0 0
    %624 = vperm.xlu0 %623, %v546
    %v625 = vpop.permute.xlu0 %624
    %628 = vset.pattern.permute.xlu0 0
    %629 = vperm.xlu0 %628, %v547
    %v630 = vpop.permute.xlu0 %629
    %633 = vset.pattern.permute.xlu0 0
    %634 = vperm.xlu0 %633, %v548
    %v635 = vpop.permute.xlu0 %634
    %638 = vset.pattern.permute.xlu0 0
    %639 = vperm.xlu0 %638, %v549
    %v640 = vpop.permute.xlu0 %639
    %643 = vset.pattern.permute.xlu0 0
    %644 = vperm.xlu0 %643, %v550
    %v645 = vpop.permute.xlu0 %644
    %648 = vset.pattern.permute.xlu0 0
    %649 = vperm.xlu0 %648, %v551
    %v650 = vpop.permute.xlu0 %649
    %653 = vset.pattern.permute.xlu0 0
    %654 = vperm.xlu0 %653, %v552
    %v655 = vpop.permute.xlu0 %654
    %658 = vset.pattern.permute.xlu0 0
    %659 = vperm.xlu0 %658, %v553
    %v660 = vpop.permute.xlu0 %659
    %663 = vset.pattern.permute.xlu0 0
    %664 = vperm.xlu0 %663, %v554
    %v665 = vpop.permute.xlu0 %664
    %668 = vset.pattern.permute.xlu0 0
    %669 = vperm.xlu0 %668, %v555
    %v670 = vpop.permute.xlu0 %669
    %673 = vset.pattern.permute.xlu0 0
    %674 = vperm.xlu0 %673, %v556
    %v675 = vpop.permute.xlu0 %674
    %678 = vset.pattern.permute.xlu0 0
    %679 = vperm.xlu0 %678, %v557
    %v680 = vpop.permute.xlu0 %679
    %683 = vset.pattern.permute.xlu0 0
    %684 = vperm.xlu0 %683, %v558
    %v685 = vpop.permute.xlu0 %684
    %688 = vset.pattern.permute.xlu0 0
    %689 = vperm.xlu0 %688, %v559
    %v690 = vpop.permute.xlu0 %689
    %693 = vset.pattern.permute.xlu0 0
    %694 = vperm.xlu0 %693, %v560
    %v695 = vpop.permute.xlu0 %694
    %698 = vset.pattern.permute.xlu0 0
    %699 = vperm.xlu0 %698, %v561
    %v700 = vpop.permute.xlu0 %699
    %703 = vset.pattern.permute.xlu0 0
    %704 = vperm.xlu0 %703, %v562
    %v705 = vpop.permute.xlu0 %704
    %708 = vset.pattern.permute.xlu0 0
    %709 = vperm.xlu0 %708, %v563
    %v710 = vpop.permute.xlu0 %709
    %713 = vset.pattern.permute.xlu0 0
    %714 = vperm.xlu0 %713, %v564
    %v715 = vpop.permute.xlu0 %714
    %718 = vset.pattern.permute.xlu0 0
    %719 = vperm.xlu0 %718, %v565
    %v720 = vpop.permute.xlu0 %719
    %723 = vset.pattern.permute.xlu0 0
    %724 = vperm.xlu0 %723, %v566
    %v725 = vpop.permute.xlu0 %724
    %v727 = vadd.f32 %v503, %v570
    %v728 = vadd.f32 %v504, %v575
    %v729 = vadd.f32 %v505, %v580
    %v730 = vadd.f32 %v506, %v585
    %v731 = vadd.f32 %v507, %v590
    %v732 = vadd.f32 %v508, %v595
    %v733 = vadd.f32 %v509, %v600
    %v734 = vadd.f32 %v510, %v605
    %v735 = vadd.f32 %v511, %v610
    %v736 = vadd.f32 %v512, %v615
    %v737 = vadd.f32 %v513, %v620
    %v738 = vadd.f32 %v514, %v625
    %v739 = vadd.f32 %v515, %v630
    %v740 = vadd.f32 %v516, %v635
    %v741 = vadd.f32 %v517, %v640
    %v742 = vadd.f32 %v518, %v645
    %v743 = vadd.f32 %v519, %v650
    %v744 = vadd.f32 %v520, %v655
    %v745 = vadd.f32 %v521, %v660
    %v746 = vadd.f32 %v522, %v665
    %v747 = vadd.f32 %v523, %v670
    %v748 = vadd.f32 %v524, %v675
    %v749 = vadd.f32 %v525, %v680
    %v750 = vadd.f32 %v526, %v685
    %v751 = vadd.f32 %v527, %v690
    %v752 = vadd.f32 %v528, %v695
    %v753 = vadd.f32 %v529, %v700
    %v754 = vadd.f32 %v530, %v705
    %v755 = vadd.f32 %v531, %v710
    %v756 = vadd.f32 %v532, %v715
    %v757 = vadd.f32 %v533, %v720
    %v758 = vadd.f32 %v534, %v725
    %v759 = vmax.f32 %v727, 0.0
    %v760 = vmax.f32 %v728, 0.0
    %v761 = vmax.f32 %v729, 0.0
    %v762 = vmax.f32 %v730, 0.0
    %v763 = vmax.f32 %v731, 0.0
    %v764 = vmax.f32 %v732, 0.0
    %v765 = vmax.f32 %v733, 0.0
    %v766 = vmax.f32 %v734, 0.0
    %v767 = vmax.f32 %v735, 0.0
    %v768 = vmax.f32 %v736, 0.0
    %v769 = vmax.f32 %v737, 0.0
    %v770 = vmax.f32 %v738, 0.0
    %v771 = vmax.f32 %v739, 0.0
    %v772 = vmax.f32 %v740, 0.0
    %v773 = vmax.f32 %v741, 0.0
    %v774 = vmax.f32 %v742, 0.0
    %v775 = vmax.f32 %v743, 0.0
    %v776 = vmax.f32 %v744, 0.0
    %v777 = vmax.f32 %v745, 0.0
    %v778 = vmax.f32 %v746, 0.0
    %v779 = vmax.f32 %v747, 0.0
    %v780 = vmax.f32 %v748, 0.0
    %v781 = vmax.f32 %v749, 0.0
    %v782 = vmax.f32 %v750, 0.0
    %v783 = vmax.f32 %v751, 0.0
    %v784 = vmax.f32 %v752, 0.0
    %v785 = vmax.f32 %v753, 0.0
    %v786 = vmax.f32 %v754, 0.0
    %v787 = vmax.f32 %v755, 0.0
    %v788 = vmax.f32 %v756, 0.0
    %v789 = vmax.f32 %v757, 0.0
    %v790 = vmax.f32 %v758, 0.0
    %v791 = vpack.c.bf16 %v760, %v759
    %v792 = vpack.c.bf16 %v762, %v761
    %v793 = vpack.c.bf16 %v764, %v763
    %v794 = vpack.c.bf16 %v766, %v765
    %v795 = vpack.c.bf16 %v768, %v767
    %v796 = vpack.c.bf16 %v770, %v769
    %v797 = vpack.c.bf16 %v772, %v771
    %v798 = vpack.c.bf16 %v774, %v773
    %v799 = vpack.c.bf16 %v776, %v775
    %v800 = vpack.c.bf16 %v778, %v777
    %v801 = vpack.c.bf16 %v780, %v779
    %v802 = vpack.c.bf16 %v782, %v781
    %v803 = vpack.c.bf16 %v784, %v783
    %v804 = vpack.c.bf16 %v786, %v785
    %v805 = vpack.c.bf16 %v788, %v787
    %v806 = vpack.c.bf16 %v790, %v789
    %v823 = vunpack.c.l.b16 %v791
    %v824 = vunpack.c.h.b16 %v791
    %v825 = vunpack.c.l.b16 %v792
    %v826 = vunpack.c.h.b16 %v792
    %v827 = vunpack.c.l.b16 %v793
    %v828 = vunpack.c.h.b16 %v793
    %v829 = vunpack.c.l.b16 %v794
    %v830 = vunpack.c.h.b16 %v794
    %v831 = vunpack.c.l.b16 %v795
    %v832 = vunpack.c.h.b16 %v795
    %v833 = vunpack.c.l.b16 %v796
    %v834 = vunpack.c.h.b16 %v796
    %v835 = vunpack.c.l.b16 %v797
    %v836 = vunpack.c.h.b16 %v797
    %v837 = vunpack.c.l.b16 %v798
    %v838 = vunpack.c.h.b16 %v798
    %v839 = vunpack.c.l.b16 %v799
    %v840 = vunpack.c.h.b16 %v799
    %v841 = vunpack.c.l.b16 %v800
    %v842 = vunpack.c.h.b16 %v800
    %v843 = vunpack.c.l.b16 %v801
    %v844 = vunpack.c.h.b16 %v801
    %v845 = vunpack.c.l.b16 %v802
    %v846 = vunpack.c.h.b16 %v802
    %v847 = vunpack.c.l.b16 %v803
    %v848 = vunpack.c.h.b16 %v803
    %v849 = vunpack.c.l.b16 %v804
    %v850 = vunpack.c.h.b16 %v804
    %v851 = vunpack.c.l.b16 %v805
    %v852 = vunpack.c.h.b16 %v805
    %v853 = vunpack.c.l.b16 %v806
    %v854 = vunpack.c.h.b16 %v806
    %v855 = vpack.c.b16 %v823, %v823
    %v856 = vpack.c.b16 %v824, %v824
    %v857 = vpack.c.b16 %v825, %v825
    %v858 = vpack.c.b16 %v826, %v826
    %v859 = vpack.c.b16 %v827, %v827
    %v860 = vpack.c.b16 %v828, %v828
    %v861 = vpack.c.b16 %v829, %v829
    %v862 = vpack.c.b16 %v830, %v830
    %v863 = vpack.c.b16 %v831, %v831
    %v864 = vpack.c.b16 %v832, %v832
    %v865 = vpack.c.b16 %v833, %v833
    %v866 = vpack.c.b16 %v834, %v834
    %v867 = vpack.c.b16 %v835, %v835
    %v868 = vpack.c.b16 %v836, %v836
    %v869 = vpack.c.b16 %v837, %v837
    %v870 = vpack.c.b16 %v838, %v838
    %v871 = vpack.c.b16 %v839, %v839
    %v872 = vpack.c.b16 %v840, %v840
    %v873 = vpack.c.b16 %v841, %v841
    %v874 = vpack.c.b16 %v842, %v842
    %v875 = vpack.c.b16 %v843, %v843
    %v876 = vpack.c.b16 %v844, %v844
    %v877 = vpack.c.b16 %v845, %v845
    %v878 = vpack.c.b16 %v846, %v846
    %v879 = vpack.c.b16 %v847, %v847
    %v880 = vpack.c.b16 %v848, %v848
    %v881 = vpack.c.b16 %v849, %v849
    %v882 = vpack.c.b16 %v850, %v850
    %v883 = vpack.c.b16 %v851, %v851
    %v884 = vpack.c.b16 %v852, %v852
    %v885 = vpack.c.b16 %v853, %v853
    %v886 = vpack.c.b16 %v854, %v854
    %919 = vst [vmem:[%s3] sm:$0xf] %v855
    %920 = vst [vmem:[%s3 + $0x4] sm:$0xf] %v856
    %921 = vst [vmem:[%s3 + $0x8] sm:$0xf] %v857
    %922 = vst [vmem:[%s3 + $0xc] sm:$0xf] %v858
    %923 = vst [vmem:[%s3 + $0x10] sm:$0xf] %v859
    %924 = vst [vmem:[%s3 + $0x14] sm:$0xf] %v860
    %925 = vst [vmem:[%s3 + $0x18] sm:$0xf] %v861
    %926 = vst [vmem:[%s3 + $0x1c] sm:$0xf] %v862
    %927 = vst [vmem:[%s3 + $0x20] sm:$0xf] %v863
    %928 = vst [vmem:[%s3 + $0x24] sm:$0xf] %v864
    %929 = vst [vmem:[%s3 + $0x28] sm:$0xf] %v865
    %930 = vst [vmem:[%s3 + $0x2c] sm:$0xf] %v866
    %931 = vst [vmem:[%s3 + $0x30] sm:$0xf] %v867
    %932 = vst [vmem:[%s3 + $0x34] sm:$0xf] %v868
    %933 = vst [vmem:[%s3 + $0x38] sm:$0xf] %v869
    %934 = vst [vmem:[%s3 + $0x3c] sm:$0xf] %v870
    %935 = vst [vmem:[%s3 + $0x40] sm:$0xf] %v871
    %936 = vst [vmem:[%s3 + $0x44] sm:$0xf] %v872
    %937 = vst [vmem:[%s3 + $0x48] sm:$0xf] %v873
    %938 = vst [vmem:[%s3 + $0x4c] sm:$0xf] %v874
    %939 = vst [vmem:[%s3 + $0x50] sm:$0xf] %v875
    %940 = vst [vmem:[%s3 + $0x54] sm:$0xf] %v876
    %941 = vst [vmem:[%s3 + $0x58] sm:$0xf] %v877
    %942 = vst [vmem:[%s3 + $0x5c] sm:$0xf] %v878
    %943 = vst [vmem:[%s3 + $0x60] sm:$0xf] %v879
    %944 = vst [vmem:[%s3 + $0x64] sm:$0xf] %v880
    %945 = vst [vmem:[%s3 + $0x68] sm:$0xf] %v881
    %946 = vst [vmem:[%s3 + $0x6c] sm:$0xf] %v882
    %947 = vst [vmem:[%s3 + $0x70] sm:$0xf] %v883
    %948 = vst [vmem:[%s3 + $0x74] sm:$0xf] %v884
    %949 = vst [vmem:[%s3 + $0x78] sm:$0xf] %v885
    %950 = vst [vmem:[%s3 + $0x7c] sm:$0xf] %v886
  $region21: #{fwd.3} parent=0 // pred_fallthru
    _
  // Predicated region
  $region22: #{fwd.3} parent=0 // pred_check
    _
  $region23: #{fwd.3} parent=0 // pred_check_branch
    %952 = sbr.rel (0) target = $region25
  $region24: #{fwd.3} parent=0 // pred_region
    _
  $region25: #{fwd.3} parent=0 // pred_fallthru
    _
  // Predicated region
  $region26: #{fwd.3} parent=0 // pred_check
    _
  $region27: #{fwd.3} parent=0 // pred_check_branch
    %954 = sbr.rel (0) target = $region29
  $region28: #{fwd.3} parent=0 // pred_region
    _
  $region29: #{fwd.3} parent=0 // pred_fallthru
    _

// kernel: fwd.5
$region0: #{fwd.5}
  #allocation0 [shape = 'u32[]', space=smem, size = 0x4, offset = 0x4, fixed_abs, tag = 'smem constant byte address 0x4 - core index']
  #allocation1 [shape = 'u32[144,128]{1,0:T(1,128)}', space=vmem, size = 0x12000, scoped, tag = 'internal scratch']
  #allocation2 [shape = 'f32[16,128]{1,0:T(8,128)}', space=vmem, size = 0x2000, scoped, tag = 'scratch operand']
  %s0 = inlined_call_operand.vmem [shape: bf16[4,16,128], index: 0, kind: input, shape index: {}]
  %s1 = inlined_call_operand.vmem [shape: bf16[4,128,128], index: 1, kind: input, shape index: {}]
  %s2 = inlined_call_operand.vmem [shape: f32[16,1], index: 2, kind: input, shape index: {}]
  %s3 = inlined_call_operand.vmem [shape: bf16[4,16,128], index: 3, kind: output, shape index: {}]
  %s4 = sld [smem:[#allocation0]]
  $region53: #{fwd.5} parent=0
    _
  %s6 = ssub.s32 1, %s4
  %s7 = scalar_select 0, %s6, %s4
  loop: start=0, step=1, limit=6
  $region2: #{fwd.5} parent=0 // loop_pre_header
    _
  $region3: #{fwd.5} parent=0 // loop_header
    %s9 = sphi 0, %s13
    %p10 = scmp.ge.s32.totalorder %s9, 6
    %s16 = sphi 0, %s42
    %s17 = sphi 0, %s38
    %s18 = sphi 0, %s34
    %s19 = sphi 0, %s30
    %s20 = sphi 0, %s16
    %s21 = sphi 0, %s17
    %s22 = sphi 0, %s18
    %s23 = sphi 0, %s19
    %s24 = sphi 0, %s20
    %s25 = sphi 0, %s21
    %s26 = sphi 0, %s22
    %s27 = sphi 0, %s23
    %s49 = sphi 0, %s51
    %s52 = sphi 0, %s49
    %s53 = sphi 0, %s52
    %s69 = sphi 0, %s53
    %s79 = sphi 0, %s81
    %s82 = sphi 0, %s79
    %s83 = sphi 0, %s82
    %s99 = sphi 0, %s83
    %s105 = sphi 0, %s107
    %s108 = sphi 0, %s105
    %s109 = sphi 0, %s108
    %s125 = sphi 0, %s109
    %s135 = sphi 0, %s137
    %s138 = sphi 0, %s135
    %s139 = sphi 0, %s138
    %s155 = sphi 0, %s139
  $region4: #{fwd.5} parent=0 // loop_header_branch
    %12 = sbr.rel (%p10) target = $region8
  $region5: #{fwd.5} parent=0 // loop_body
    %s14 = ssub.s32 %s9, 1
    %s15 = ssub.s32 %s9, 2
    %s28 = sadd.s32 1, %s19
    %p29 = scmp.ge.s32.totalorder %s28, 1
    %s30 = scalar_select %p29, 0, %s28
    %s31 = sadd.s32 1, %s18
    %s32 = scalar_select %p29, %s31, %s18
    %p33 = scmp.ge.s32.totalorder %s32, 1
    %s34 = scalar_select %p33, 0, %s32
    %s35 = sadd.s32 1, %s17
    %s36 = scalar_select %p33, %s35, %s17
    %p37 = scmp.ge.s32.totalorder %s36, 1
    %s38 = scalar_select %p37, 0, %s36
    %s39 = sadd.s32 1, %s16
    %s40 = scalar_select %p37, %s39, %s16
    %p41 = scmp.ge.s32.totalorder %s40, 4
    %s42 = scalar_select %p41, 0, %s40
    %s43 = ssub.s32 %s16, %s42
    %s44 = ssub.s32 %s17, %s38
    %s45 = sor.u32 %s43, %s44
    %s46 = ssub.s32 %s19, %s30
    %s47 = sor.u32 %s45, %s46
    %p48 = scmp.eq.s32.totalorder %s47, 0
    %s50 = sadd.s32 %s49, 1
    %s51 = scalar_select %p48, %s49, %s50
    %p54 = pneg %p48
    %p55 = scmp.eq.s32.totalorder %s9, 3
    %p56 = por %p54, %p55
    %p57 = scmp.ne.s32.totalorder %s49, %s52
    %p58 = scmp.eq.s32.totalorder %s9, 0
    %p59 = por %p57, %p58
    %p60 = scmp.ne.s32.totalorder %s49, %s52
    %p61 = scmp.eq.s32.totalorder %s14, 3
    %p62 = por %p60, %p61
    %p63 = scmp.ne.s32.totalorder %s52, %s53
    %p64 = scmp.eq.s32.totalorder %s14, 0
    %p65 = por %p63, %p64
    %p66 = scmp.ne.s32.totalorder %s52, %s53
    %p67 = scmp.eq.s32.totalorder %s15, 3
    %p68 = por %p66, %p67
    %p70 = scmp.ne.s32.totalorder %s53, %s69
    %p71 = scmp.eq.s32.totalorder %s15, 0
    %p72 = por %p70, %p71
    %s73 = ssub.s32 %s16, %s42
    %s74 = ssub.s32 %s19, %s30
    %s75 = sor.u32 %s73, %s74
    %s76 = ssub.s32 %s18, %s34
    %s77 = sor.u32 %s75, %s76
    %p78 = scmp.eq.s32.totalorder %s77, 0
    %s80 = sadd.s32 %s79, 1
    %s81 = scalar_select %p78, %s79, %s80
    %p84 = pneg %p78
    %p85 = scmp.eq.s32.totalorder %s9, 3
    %p86 = por %p84, %p85
    %p87 = scmp.ne.s32.totalorder %s79, %s82
    %p88 = scmp.eq.s32.totalorder %s9, 0
    %p89 = por %p87, %p88
    %p90 = scmp.ne.s32.totalorder %s79, %s82
    %p91 = scmp.eq.s32.totalorder %s14, 3
    %p92 = por %p90, %p91
    %p93 = scmp.ne.s32.totalorder %s82, %s83
    %p94 = scmp.eq.s32.totalorder %s14, 0
    %p95 = por %p93, %p94
    %p96 = scmp.ne.s32.totalorder %s82, %s83
    %p97 = scmp.eq.s32.totalorder %s15, 3
    %p98 = por %p96, %p97
    %p100 = scmp.ne.s32.totalorder %s83, %s99
    %p101 = scmp.eq.s32.totalorder %s15, 0
    %p102 = por %p100, %p101
    %s103 = ssub.s32 %s17, %s38
    %p104 = scmp.eq.s32.totalorder %s103, 0
    %s106 = sadd.s32 %s105, 1
    %s107 = scalar_select %p104, %s105, %s106
    %p110 = pneg %p104
    %p111 = scmp.eq.s32.totalorder %s9, 3
    %p112 = por %p110, %p111
    %p113 = scmp.ne.s32.totalorder %s105, %s108
    %p114 = scmp.eq.s32.totalorder %s9, 0
    %p115 = por %p113, %p114
    %p116 = scmp.ne.s32.totalorder %s105, %s108
    %p117 = scmp.eq.s32.totalorder %s14, 3
    %p118 = por %p116, %p117
    %p119 = scmp.ne.s32.totalorder %s108, %s109
    %p120 = scmp.eq.s32.totalorder %s14, 0
    %p121 = por %p119, %p120
    %p122 = scmp.ne.s32.totalorder %s108, %s109
    %p123 = scmp.eq.s32.totalorder %s15, 3
    %p124 = por %p122, %p123
    %p126 = scmp.ne.s32.totalorder %s109, %s125
    %p127 = scmp.eq.s32.totalorder %s15, 0
    %p128 = por %p126, %p127
    %s129 = ssub.s32 %s16, %s42
    %s130 = ssub.s32 %s17, %s38
    %s131 = sor.u32 %s129, %s130
    %s132 = ssub.s32 %s18, %s34
    %s133 = sor.u32 %s131, %s132
    %p134 = scmp.eq.s32.totalorder %s133, 0
    %s136 = sadd.s32 %s135, 1
    %s137 = scalar_select %p134, %s135, %s136
    %p140 = pneg %p134
    %p141 = scmp.eq.s32.totalorder %s9, 3
    %p142 = por %p140, %p141
    %p143 = scmp.ne.s32.totalorder %s135, %s138
    %p144 = scmp.eq.s32.totalorder %s9, 0
    %p145 = por %p143, %p144
    %p146 = scmp.ne.s32.totalorder %s135, %s138
    %p147 = scmp.eq.s32.totalorder %s14, 3
    %p148 = por %p146, %p147
    %p149 = scmp.ne.s32.totalorder %s138, %s139
    %p150 = scmp.eq.s32.totalorder %s14, 0
    %p151 = por %p149, %p150
    %p152 = scmp.ne.s32.totalorder %s138, %s139
    %p153 = scmp.eq.s32.totalorder %s15, 3
    %p154 = por %p152, %p153
    %p156 = scmp.ne.s32.totalorder %s139, %s155
    %p157 = scmp.eq.s32.totalorder %s15, 0
    %p158 = por %p156, %p157
    %p159 = scmp.le.s32.totalorder 1, %s9
    %p160 = scmp.lt.s32.totalorder %s9, 5
    %p161 = pnand %p159, %p160
    %p162 = pneg %p161
    // Predicated region
    $region9: #{fwd.5} parent=5 // pred_check
      _
    $region10: #{fwd.5} parent=5 // pred_check_branch
      %164 = sbr.rel (%p161) target = $region12
    $region11: #{fwd.5} parent=5 // pred_region
      %s165 = ssub.s32 %s9, 1
      // Predicated region
      $region13: #{fwd.5} parent=11 // pred_check
        %p166 = pneg %p121
      $region14: #{fwd.5} parent=11 // pred_check_branch
        %168 = sbr.rel (%p166) target = $region16
      $region15: #{fwd.5} parent=11 // pred_region
        %s169 = smul.u32 2, %s21
        %p170 = scmp.lt.s32.totalorder %s169, 1
        %s171 = scalar_select %p170, %s169, 1
        %s172 = smul.addr %s171, 8
        %s173 = scalar_lea.vmem %s2, %s172
        %s174 = smul.u32 2, %s21
      $region16: #{fwd.5} parent=11 // pred_fallthru
        _
    $region12: #{fwd.5} parent=5 // pred_fallthru
      _
    %p175 = scmp.lt.s32.totalorder %s9, 4
    // Predicated region
    $region17: #{fwd.5} parent=5 // pred_check
      %p176 = pneg %p175
    $region18: #{fwd.5} parent=5 // pred_check_branch
      %178 = sbr.rel (%p176) target = $region20
    $region19: #{fwd.5} parent=5 // pred_region
      // Predicated region
      $region21: #{fwd.5} parent=19 // pred_check
        %p179 = pneg %p59
      $region22: #{fwd.5} parent=19 // pred_check_branch
        %181 = sbr.rel (%p179) target = $region24
      $region23: #{fwd.5} parent=19 // pred_region
        %s182 = smul.u32 2, %s17
        %p183 = scmp.lt.s32.totalorder %s16, 3
        %s184 = scalar_select %p183, %s16, 3
        %p185 = scmp.lt.s32.totalorder %s182, 1
        %s186 = scalar_select %p185, %s182, 1
        %p187 = scmp.lt.s32.totalorder %s19, 0
        %s188 = scalar_select %p187, %s19, 0
        %s189 = sadd.s32 %s188, %s186
        %s190 = smul.addr %s184, 2
        %s191 = sadd.s32 %s189, %s190
        %s192 = smul.addr %s191, 4
        %s193 = scalar_lea.vmem %s0, %s192
        %s194 = smul.u32 2, %s17
      $region24: #{fwd.5} parent=19 // pred_fallthru
        _
      // Predicated region
      $region25: #{fwd.5} parent=19 // pred_check
        %p195 = pneg %p89
      $region26: #{fwd.5} parent=19 // pred_check_branch
        %197 = sbr.rel (%p195) target = $region28
      $region27: #{fwd.5} parent=19 // pred_region
        %s198 = smul.u32 16, %s19
        %p199 = scmp.lt.s32.totalorder %s16, 3
        %s200 = scalar_select %p199, %s16, 3
        %p201 = scmp.lt.s32.totalorder %s198, 15
        %s202 = scalar_select %p201, %s198, 15
        %p203 = scmp.lt.s32.totalorder %s18, 0
        %s204 = scalar_select %p203, %s18, 0
        %s205 = sadd.s32 %s204, %s202
        %s206 = smul.addr %s200, 16
        %s207 = sadd.s32 %s205, %s206
        %s208 = smul.addr %s207, 4
        %s209 = scalar_lea.vmem %s1, %s208
        %s210 = smul.u32 16, %s19
      $region28: #{fwd.5} parent=19 // pred_fallthru
        _
    $region20: #{fwd.5} parent=5 // pred_fallthru
      _
    %p211 = scmp.le.s32.totalorder 1, %s9
    %p212 = scmp.lt.s32.totalorder %s9, 5
    %p213 = pnand %p211, %p212
    %p214 = pneg %p213
    // Predicated region
    $region29: #{fwd.5} parent=5 // pred_check
      _
    $region30: #{fwd.5} parent=5 // pred_check_branch
      %216 = sbr.rel (%p213) target = $region32
    $region31: #{fwd.5} parent=5 // pred_region
      %s217 = ssub.s32 %s9, 1
      %s218 = smul.u32 2, %s21
      %p219 = scmp.lt.s32.totalorder %s20, 3
      %s220 = scalar_select %p219, %s20, 3
      %p221 = scmp.lt.s32.totalorder %s218, 1
      %s222 = scalar_select %p221, %s218, 1
      %p223 = scmp.lt.s32.totalorder %s23, 0
      %s224 = scalar_select %p223, %s23, 0
      %s225 = sadd.s32 %s224, %s222
      %s226 = smul.addr %s220, 2
      %s227 = sadd.s32 %s225, %s226
      %s228 = smul.addr %s227, 4
      %s229 = scalar_lea.vmem %s0, %s228
      %p230 = pneg %p65
      %p231 = pneg %p62
      %s232 = smul.u32 16, %s23
      %p233 = scmp.lt.s32.totalorder %s20, 3
      %s234 = scalar_select %p233, %s20, 3
      %p235 = scmp.lt.s32.totalorder %s232, 15
      %s236 = scalar_select %p235, %s232, 15
      %p237 = scmp.lt.s32.totalorder %s22, 0
      %s238 = scalar_select %p237, %s22, 0
      %s239 = sadd.s32 %s238, %s236
      %s240 = smul.addr %s234, 16
      %s241 = sadd.s32 %s239, %s240
      %s242 = smul.addr %s241, 4
      %s243 = scalar_lea.vmem %s1, %s242
      %p244 = pneg %p95
      %p245 = pneg %p92
      %s246 = smul.u32 2, %s21
      %p247 = scmp.lt.s32.totalorder %s246, 1
      %s248 = scalar_select %p247, %s246, 1
      %s249 = smul.addr %s248, 8
      %s250 = scalar_lea.vmem %s2, %s249
      %p251 = pneg %p121
      %p252 = pneg %p118
      %p253 = pneg %p151
      %p254 = pneg %p148
      %s255 = smul.u32 2, %s21
      %p256 = scmp.lt.s32.totalorder %s20, 3
      %s257 = scalar_select %p256, %s20, 3
      %p258 = scmp.lt.s32.totalorder %s255, 1
      %s259 = scalar_select %p258, %s255, 1
      %p260 = scmp.lt.s32.totalorder %s22, 0
      %s261 = scalar_select %p260, %s22, 0
      %s262 = sadd.s32 %s261, %s259
      %s263 = smul.addr %s257, 2
      %s264 = sadd.s32 %s262, %s263
      %s265 = smul.addr %s264, 4
      %s266 = scalar_lea.vmem %s3, %s265
      %s267 = smul.u32 2, %s21
      %p268 = scmp.lt.s32.totalorder %s20, 3
      %s269 = scalar_select %p268, %s20, 3
      %p270 = scmp.lt.s32.totalorder %s267, 1
      %s271 = scalar_select %p270, %s267, 1
      %p272 = scmp.lt.s32.totalorder %s23, 0
      %s273 = scalar_select %p272, %s23, 0
      %s274 = sadd.s32 %s273, %s271
      %s275 = smul.addr %s269, 2
      %s276 = sadd.s32 %s274, %s275
      %s277 = smul.addr %s276, 4
      %s278 = scalar_lea.vmem %s0, %s277
      %s279 = smul.u32 2, %s21
      %s280 = smul.u32 16, %s23
      %p281 = scmp.lt.s32.totalorder %s20, 3
      %s282 = scalar_select %p281, %s20, 3
      %p283 = scmp.lt.s32.totalorder %s280, 15
      %s284 = scalar_select %p283, %s280, 15
      %p285 = scmp.lt.s32.totalorder %s22, 0
      %s286 = scalar_select %p285, %s22, 0
      %s287 = sadd.s32 %s286, %s284
      %s288 = smul.addr %s282, 16
      %s289 = sadd.s32 %s287, %s288
      %s290 = smul.addr %s289, 4
      %s291 = scalar_lea.vmem %s1, %s290
      %s292 = smul.u32 16, %s23
      %s293 = smul.u32 2, %s21
      %p294 = scmp.lt.s32.totalorder %s293, 1
      %s295 = scalar_select %p294, %s293, 1
      %s296 = smul.addr %s295, 8
      %s297 = scalar_lea.vmem %s2, %s296
      %s298 = smul.u32 2, %s21
      %s299 = smul.u32 2, %s21
      %p300 = scmp.lt.s32.totalorder %s20, 3
      %s301 = scalar_select %p300, %s20, 3
      %p302 = scmp.lt.s32.totalorder %s299, 1
      %s303 = scalar_select %p302, %s299, 1
      %p304 = scmp.lt.s32.totalorder %s22, 0
      %s305 = scalar_select %p304, %s22, 0
      %s306 = sadd.s32 %s305, %s303
      %s307 = smul.addr %s301, 2
      %s308 = sadd.s32 %s306, %s307
      %s309 = smul.addr %s308, 4
      %s310 = scalar_lea.vmem %s3, %s309
      %s311 = smul.u32 2, %s21
      %p313 = scmp.eq.s32.totalorder %s23, 0
      // Predicated region
      $region33: #{fwd.5} parent=31 // pred_check
        %p314 = pneg %p313
      $region34: #{fwd.5} parent=31 // pred_check_branch
        %316 = sbr.rel (%p314) target = $region36
      $region35: #{fwd.5} parent=31 // pred_region
        %317 = vst [vmem:[#allocation2] sm:$0xff] 0.0
        %318 = vst [vmem:[#allocation2 + $0x8] sm:$0xff] 0.0
      $region36: #{fwd.5} parent=31 // pred_fallthru
        _
      %v319 = vld [vmem:[#allocation2] sm:$0xff]
      %v320 = vld [vmem:[#allocation2 + $0x8] sm:$0xff]
      %v321 = vld [vmem:[%s278] sm:$0xf]
      %v322 = vld [vmem:[%s278 + $0x4] sm:$0xf]
      %v323 = vld [vmem:[%s291] sm:$0xf]
      %v324 = vld [vmem:[%s291 + $0x4] sm:$0xf]
      %v325 = vld [vmem:[%s291 + $0x8] sm:$0xf]
      %v326 = vld [vmem:[%s291 + $0xc] sm:$0xf]
      %v327 = vld [vmem:[%s291 + $0x10] sm:$0xf]
      %v328 = vld [vmem:[%s291 + $0x14] sm:$0xf]
      %v329 = vld [vmem:[%s291 + $0x18] sm:$0xf]
      %v330 = vld [vmem:[%s291 + $0x1c] sm:$0xf]
      %v331 = vld [vmem:[%s291 + $0x20] sm:$0xf]
      %v332 = vld [vmem:[%s291 + $0x24] sm:$0xf]
      %v333 = vld [vmem:[%s291 + $0x28] sm:$0xf]
      %v334 = vld [vmem:[%s291 + $0x2c] sm:$0xf]
      %v335 = vld [vmem:[%s291 + $0x30] sm:$0xf]
      %v336 = vld [vmem:[%s291 + $0x34] sm:$0xf]
      %v337 = vld [vmem:[%s291 + $0x38] sm:$0xf]
      %v338 = vld [vmem:[%s291 + $0x3c] sm:$0xf]
      %v341 = vunpack.c.l.b16 %v321
      %v342 = vunpack.c.l.b16 %v322
      %v343 = vpack.c.b16 %v342, %v341
      %v361 = vunpack.c.l.b16 %v323
      %v362 = vunpack.c.l.b16 %v324
      %v363 = vunpack.c.l.b16 %v325
      %v364 = vunpack.c.l.b16 %v326
      %v365 = vunpack.c.l.b16 %v327
      %v366 = vunpack.c.l.b16 %v328
      %v367 = vunpack.c.l.b16 %v329
      %v368 = vunpack.c.l.b16 %v330
      %v369 = vunpack.c.l.b16 %v331
      %v370 = vunpack.c.l.b16 %v332
      %v371 = vunpack.c.l.b16 %v333
      %v372 = vunpack.c.l.b16 %v334
      %v373 = vunpack.c.l.b16 %v335
      %v374 = vunpack.c.l.b16 %v336
      %v375 = vunpack.c.l.b16 %v337
      %v376 = vunpack.c.l.b16 %v338
      %v377 = vpack.c.b16 %v362, %v361
      %v378 = vpack.c.b16 %v364, %v363
      %v379 = vpack.c.b16 %v366, %v365
      %v380 = vpack.c.b16 %v368, %v367
      %v381 = vpack.c.b16 %v370, %v369
      %v382 = vpack.c.b16 %v372, %v371
      %v383 = vpack.c.b16 %v374, %v373
      %v384 = vpack.c.b16 %v376, %v375
      %393 = vmatprep.subr.bf16.mxu0 0
      %394 = vmatpush1.bf16.msra.mxu0 %v377
      %395 = vmatprep.subr.bf16.mxu0 0
      %396 = vmatpush1.bf16.msra.mxu0 %v378
      %397 = vmatprep.subr.bf16.mxu0 0
      %398 = vmatpush1.bf16.msra.mxu0 %v379
      %399 = vmatprep.subr.bf16.mxu0 0
      %400 = vmatpush1.bf16.msra.mxu0 %v380
      %401 = vmatprep.subr.bf16.mxu0 0
      %402 = vmatpush1.bf16.msra.mxu0 %v381
      %403 = vmatprep.subr.bf16.mxu0 0
      %404 = vmatpush1.bf16.msra.mxu0 %v382
      %405 = vmatprep.subr.bf16.mxu0 0
      %406 = vmatpush1.bf16.msra.mxu0 %v383
      %407 = vmatprep.subr.bf16.mxu0 0
      %408 = vmatpush1.bf16.msra.mxu0 %v384
      %409 = vmatprep.subr.bf16.mxu0 0
      %410 = vmatpush1.bf16.msra.mxu0 0
      %411 = vmatprep.subr.bf16.mxu0 0
      %412 = vmatpush1.bf16.msra.mxu0 0
      %413 = vmatprep.subr.bf16.mxu0 0
      %414 = vmatpush1.bf16.msra.mxu0 0
      %415 = vmatprep.subr.bf16.mxu0 0
      %416 = vmatpush1.bf16.msra.mxu0 0
      %417 = vmatprep.subr.bf16.mxu0 0
      %418 = vmatpush1.bf16.msra.mxu0 0
      %419 = vmatprep.subr.bf16.mxu0 0
      %420 = vmatpush1.bf16.msra.mxu0 0
      %421 = vmatprep.subr.bf16.mxu0 0
      %422 = vmatpush1.bf16.msra.mxu0 0
      %423 = vmatprep.subr.bf16.mxu0 0
      %424 = vmatpush1.bf16.msra.mxu0 0
      %425 = vmatprep.mubr.bf16.mxu0 0
      %426 = vmatmul.mubr.bf16.gmra.mrb[0].mxu0 %v343
      %v427 = vpop.f32.mrb[0].mxu0
      %v428 = vadd.f32 0.0, %v427
      %v429 = vpop.f32.mrb[0].mxu0
      %v430 = vpop.f32.mrb[0].mxu0
      %v431 = vadd.f32 0.0, %v430
      %v432 = vpop.f32.mrb[0].mxu0
      %433 = vdwg.mxu0
      %v434 = vadd.f32 %v319, %v428
      %v435 = vadd.f32 %v320, %v431
      %436 = vst [vmem:[#allocation2] sm:$0xff] %v434
      %437 = vst [vmem:[#allocation2 + $0x8] sm:$0xff] %v435
      // Predicated region
      $region37: #{fwd.5} parent=31 // pred_check
        %p438 = pneg %p313
      $region38: #{fwd.5} parent=31 // pred_check_branch
        %440 = sbr.rel (%p438) target = $region40
      $region39: #{fwd.5} parent=31 // pred_region
        %v441 = vld [vmem:[#allocation2] sm:$0xff]
        %v442 = vld [vmem:[#allocation2 + $0x8] sm:$0xff]
        %v443 = vld [vmem:[%s297] sm:$0xff]
        %v444 = vld [vmem:[%s297 + $0x8] sm:$0xff]
        %446 = vset.pattern.permute.xlu0 0
        %447 = vperm.xlu0 %446, %v443
        %v448 = vpop.permute.xlu0 %447
        %451 = vset.pattern.permute.xlu0 0
        %452 = vperm.xlu0 %451, %v444
        %v453 = vpop.permute.xlu0 %452
        %v455 = vadd.f32 %v441, %v448
        %v456 = vadd.f32 %v442, %v453
        %v457 = vxor.u32 %v455, 2147483648
        %v458 = vxor.u32 %v456, 2147483648
        %v459 = vmul.f32 %v457, 1.442695
        %v460 = vpow.pop %v459
        %v461 = vmul.f32 %v458, 1.442695
        %v462 = vpow.pop %v461
        %v463 = vadd.f32 %v460, 1.0
        %v464 = vadd.f32 %v462, 1.0
        %v465 = vrcp.pop %v463
        %v466 = vmul.f32 1.0, %v465
        %v467 = vrcp.pop %v464
        %v468 = vmul.f32 1.0, %v467
        %v469 = vpack.c.bf16 %v468, %v466
        %v471 = vunpack.c.l.b16 %v469
        %v472 = vunpack.c.h.b16 %v469
        %v473 = vpack.c.b16 %v471, %v471
        %v474 = vpack.c.b16 %v472, %v472
        %477 = vst [vmem:[%s310] sm:$0xf] %v473
        %478 = vst [vmem:[%s310 + $0x4] sm:$0xf] %v474
      $region40: #{fwd.5} parent=31 // pred_fallthru
        _
      %s479 = smul.u32 2, %s21
      %p480 = scmp.lt.s32.totalorder %s20, 3
      %s481 = scalar_select %p480, %s20, 3
      %p482 = scmp.lt.s32.totalorder %s479, 1
      %s483 = scalar_select %p482, %s479, 1
      %p484 = scmp.lt.s32.totalorder %s22, 0
      %s485 = scalar_select %p484, %s22, 0
      %s486 = sadd.s32 %s485, %s483
      %s487 = smul.addr %s481, 2
      %s488 = sadd.s32 %s486, %s487
      %s489 = smul.addr %s488, 4
      %s490 = scalar_lea.vmem %s3, %s489
      // Predicated region
      $region41: #{fwd.5} parent=31 // pred_check
        %p491 = pneg %p148
      $region42: #{fwd.5} parent=31 // pred_check_branch
        %493 = sbr.rel (%p491) target = $region44
      $region43: #{fwd.5} parent=31 // pred_region
        %s494 = smul.u32 2, %s21
      $region44: #{fwd.5} parent=31 // pred_fallthru
        _
    $region32: #{fwd.5} parent=5 // pred_fallthru
      _
    %p495 = scmp.le.s32.totalorder 2, %s9
    // Predicated region
    $region45: #{fwd.5} parent=5 // pred_check
      %p496 = pneg %p495
    $region46: #{fwd.5} parent=5 // pred_check_branch
      %498 = sbr.rel (%p496) target = $region48
    $region47: #{fwd.5} parent=5 // pred_region
      %s499 = ssub.s32 %s9, 2
      // Predicated region
      $region49: #{fwd.5} parent=47 // pred_check
        %p500 = pneg %p154
      $region50: #{fwd.5} parent=47 // pred_check_branch
        %502 = sbr.rel (%p500) target = $region52
      $region51: #{fwd.5} parent=47 // pred_region
        %s503 = smul.u32 2, %s25
        %p504 = scmp.lt.s32.totalorder %s24, 3
        %s505 = scalar_select %p504, %s24, 3
        %p506 = scmp.lt.s32.totalorder %s503, 1
        %s507 = scalar_select %p506, %s503, 1
        %p508 = scmp.lt.s32.totalorder %s26, 0
        %s509 = scalar_select %p508, %s26, 0
        %s510 = sadd.s32 %s509, %s507
        %s511 = smul.addr %s505, 2
        %s512 = sadd.s32 %s510, %s511
        %s513 = smul.addr %s512, 4
        %s514 = scalar_lea.vmem %s3, %s513
      $region52: #{fwd.5} parent=47 // pred_fallthru
        _
    $region48: #{fwd.5} parent=5 // pred_fallthru
      _
  $region6: #{fwd.5} parent=0 // loop_footer
    %s13 = sadd.s32 1, %s9
  $region7: #{fwd.5} parent=0 // loop_footer_branch
    %8 = sbr.rel target = $region3
  $region8: #{fwd.5} parent=0 // loop_exit
    _

</llo_original>
